<compile_context>
chip_gen: v7x
topology: tpu7x:2x2x1
jax: 0.10.0
libtpu: 0.0.40
codegen_flags: <defaults>
</compile_context>

<pallas_src>
import functools

import jax
import jax.numpy as jnp
from jax.experimental import pallas as pl
from jax.experimental.pallas import tpu as pltpu


def _round_up(x, m):
    return ((x + m - 1) // m) * m


def _mlp_kernel(num_layers, *refs):
    """refs = (x_ref, w0_ref, b0_ref, w1_ref, b1_ref, ..., o_ref).

    x arrives as f32 and is cast to bf16 in-kernel (VPU); weights are bf16,
    biases (1, out) f32.  Matmuls accumulate in f32 on the MXU; bias add /
    ReLU happen in f32; the logits are stored as bf16 (lane-dense, 128-wide).
    """
    x_ref = refs[0]
    o_ref = refs[-1]
    param_refs = refs[1:-1]

    h_bf16 = x_ref[...].astype(jnp.bfloat16)            # (TB, in) f32 -> bf16
    acc = None
    for i in range(num_layers):
        w = param_refs[2 * i][...]                       # (in, out) bf16
        b = param_refs[2 * i + 1][...]                   # (1, out)  f32
        acc = jnp.dot(h_bf16, w, preferred_element_type=jnp.float32) + b
        if i < num_layers - 1:                           # ReLU on hidden layers only
            acc = jnp.maximum(acc, 0.0)
            h_bf16 = acc.astype(jnp.bfloat16)            # bf16 operand for next MXU pass
    o_ref[...] = acc.astype(o_ref.dtype)


def prepare_classifier_params(params):
    """One-time param prep: bf16 weights, (1,out) f32 biases, last layer padded
    to a full 128-lane width.  Call once and reuse across forward calls."""
    lane = 128
    prepared = []
    n = len(params)
    for i, (W, b) in enumerate(params):
        W = jnp.asarray(W, jnp.float32)
        b = jnp.asarray(b, jnp.float32)
        if i == n - 1:
            padded = _round_up(max(W.shape[1], 1), lane)
            if padded != W.shape[1]:
                W = jnp.pad(W, ((0, 0), (0, padded - W.shape[1])))
                b = jnp.pad(b, (0, padded - b.shape[0]))
        prepared.append((W.astype(jnp.bfloat16),
                         b.reshape(1, -1).astype(jnp.float32)))
    return prepared


def _pick_batch_tile(batch, batch_tile):
    """Rows per grid step: multiple of 16 (bf16 sublane packing), <= batch_tile,
    with >=2 balanced (even) grid steps when the batch allows (v7x megacore)."""
    full = _round_up(batch, 16)
    if full <= batch_tile:
        n = 2 if batch >= 32 else 1
    else:
        n = -(-batch // batch_tile)
        if n > 1 and n % 2 == 1:
            n += 1                      # even step count for 2 TensorCores
    return _round_up(-(-batch // n), 16)


def classifier_forward(w, prepared_params, c_shape, *,
                       batch_tile=1024, min_pallas_batch=64):
    """Run the MLP classifier.

    Args:
      w:               (batch, w_shape) f32 latent vectors.
      prepared_params: output of prepare_classifier_params().
      c_shape:         true number of classes (result sliced to this width).
      batch_tile:      max rows per grid step.
      min_pallas_batch: below this, use a plain-jnp path (overhead-bound).
    """
    w = jnp.asarray(w, jnp.float32)
    batch, w_shape = w.shape
    num_layers = len(prepared_params)
    padded_c = prepared_params[-1][0].shape[1]

    if batch < min_pallas_batch:
        # TODO(synk): fuse this tiny head into the producer's epilogue.
        h = w.astype(jnp.bfloat16)
        acc = None
        for i, (W, b) in enumerate(prepared_params):
            acc = jnp.dot(h, W, preferred_element_type=jnp.float32) + b
            if i < num_layers - 1:
                acc = jnp.maximum(acc, 0.0)
                h = acc.astype(jnp.bfloat16)
        return acc[:, :c_shape]

    tb = _pick_batch_tile(batch, batch_tile)
    padded_batch = _round_up(batch, tb)
    if padded_batch != batch:
        w = jnp.pad(w, ((0, padded_batch - batch), (0, 0)))

    resident = pl.Buffered(1)  # params never change across grid steps
    flat_args = [w]
    in_specs = [pl.BlockSpec((tb, w_shape), lambda i: (i, 0))]
    for (W, b) in prepared_params:
        flat_args.append(W)
        in_specs.append(
            pl.BlockSpec(W.shape, lambda i: (0, 0), pipeline_mode=resident))
        flat_args.append(b)
        in_specs.append(
            pl.BlockSpec(b.shape, lambda i: (0, 0), pipeline_mode=resident))

    grid = (padded_batch // tb,)

    # VMEM estimate: double-buffered x/out tiles + single-buffered resident
    # params + f32 intermediates.  Raise the scoped limit (16 MiB default on
    # v5e) only when we would actually exceed it.
    max_width = max(max(W.shape) for (W, _) in prepared_params)
    est = (2 * tb * w_shape * 4 + 2 * tb * padded_c * 2
           + sum(W.size * 2 + b.size * 4 for (W, b) in prepared_params)
           + 2 * tb * max_width * 4)
    cp_kwargs = dict(dimension_semantics=("parallel",))
    if est > (12 << 20):
        cp_kwargs["vmem_limit_bytes"] = min(est + (8 << 20), 96 << 20)

    out_padded = pl.pallas_call(
        functools.partial(_mlp_kernel, num_layers),
        out_shape=jax.ShapeDtypeStruct((padded_batch, padded_c), jnp.bfloat16),
        grid=grid,
        in_specs=in_specs,
        out_specs=pl.BlockSpec((tb, padded_c), lambda i: (i, 0)),
        compiler_params=pltpu.CompilerParams(**cp_kwargs),
    )(*flat_args)

    # Glue: drop padded batch rows and padded logit columns; return f32 logits.
    return out_padded[:batch, :c_shape].astype(jnp.float32)


def init_classifier_params(key, hidden_layers=1, w_shape=512, c_shape=2):
    """Deterministic init mirroring torchvision.ops.MLP / nn.Linear shapes."""
    hidden_channels = [w_shape // (2 * (i + 1)) for i in range(hidden_layers)] + [c_shape]
    dims = [w_shape] + hidden_channels
    params = []
    for i in range(len(dims) - 1):
        fan_in, fan_out = dims[i], dims[i + 1]
        key, kw, kb = jax.random.split(key, 3)
        bound = 1.0 / (fan_in ** 0.5)
        W = jax.random.uniform(kw, (fan_in, fan_out), jnp.float32, -bound, bound)
        b = jax.random.uniform(kb, (fan_out,), jnp.float32, -bound, bound)
        params.append((W, b))
    return params


if __name__ == "__main__":
    hidden_layers = 1
    w_shape = 512
    c_shape = 2

    key = jax.random.PRNGKey(0)
    key, kx_small, kx_large = jax.random.split(key, 3)

    params = init_classifier_params(key, hidden_layers, w_shape, c_shape)
    prepared = prepare_classifier_params(params)      # one-time bf16 cast + pad

    def ref_forward(x):
        # Pure-JAX reference with the same numerics (bf16 operands, f32 acc).
        h = x.astype(jnp.bfloat16)
        acc = None
        for i, (W, b) in enumerate(prepared):
            acc = jnp.dot(h, W, preferred_element_type=jnp.float32) + b
            if i < len(prepared) - 1:
                acc = jnp.maximum(acc, 0.0)
                h = acc.astype(jnp.bfloat16)
        return acc[:, :c_shape]

    # --- Large batch: Pallas path (grid of 2 "parallel" batch tiles). ---
    batch_large = 512
    x_large = jax.random.normal(kx_large, (batch_large, w_shape), jnp.float32)
    logits_large = jax.block_until_ready(
        classifier_forward(x_large, prepared, c_shape))
    ref_large = ref_forward(x_large).astype(jnp.bfloat16).astype(jnp.float32)
    assert logits_large.shape == (batch_large, c_shape)
    assert jnp.allclose(logits_large, ref_large, atol=2e-2, rtol=2e-2), (
        float(jnp.max(jnp.abs(logits_large - ref_large))))

    # --- Tiny batch (shipped case): jnp fallback path. ---
    batch_small = 8
    x_small = jax.random.normal(kx_small, (batch_small, w_shape), jnp.float32)
    logits_small = jax.block_until_ready(
        classifier_forward(x_small, prepared, c_shape))
    ref_small = ref_forward(x_small)
    assert logits_small.shape == (batch_small, c_shape)
    assert jnp.allclose(logits_small, ref_small, atol=2e-2, rtol=2e-2)

    print("KERNEL_OK")
</pallas_src>

<mosaic_0001>
module attributes {stable_mosaic.version = 11 : i64} {
  func.func @_mlp_kernel(%arg0: i32, %arg1: memref<256x512xf32, #tpu.memory_space<vmem>>, %arg2: memref<512x256xbf16, #tpu.memory_space<vmem>>, %arg3: memref<1x256xf32, #tpu.memory_space<vmem>>, %arg4: memref<256x128xbf16, #tpu.memory_space<vmem>>, %arg5: memref<1x128xf32, #tpu.memory_space<vmem>>, %arg6: memref<256x128xbf16, #tpu.memory_space<vmem>>) attributes {dimension_semantics = [#tpu.dimension_semantics<parallel>], iteration_bounds = array<i64: 2>, scalar_prefetch = 0 : i64, scratch_operands = 0 : i64, tpu.core_type = #tpu.core_type<tc>, window_params = [{transform_indices = @transform_0, window_bounds = array<i64: 256, 512>}, {pipeline_mode = #tpu.pipeline_mode<synchronous>, transform_indices = @transform_1, window_bounds = array<i64: 512, 256>}, {pipeline_mode = #tpu.pipeline_mode<synchronous>, transform_indices = @transform_2, window_bounds = array<i64: 1, 256>}, {pipeline_mode = #tpu.pipeline_mode<synchronous>, transform_indices = @transform_3, window_bounds = array<i64: 256, 128>}, {pipeline_mode = #tpu.pipeline_mode<synchronous>, transform_indices = @transform_4, window_bounds = array<i64: 1, 128>}, {transform_indices = @transform_5, window_bounds = array<i64: 256, 128>}]} {
    %c0 = arith.constant 0 : index
    %c0_0 = arith.constant 0 : index
    %0 = vector.load %arg1[%c0, %c0_0] : memref<256x512xf32, #tpu.memory_space<vmem>>, vector<256x512xf32>
    %1 = arith.truncf %0 : vector<256x512xf32> to vector<256x512xbf16>
    %c0_1 = arith.constant 0 : index
    %c0_2 = arith.constant 0 : index
    %2 = vector.load %arg2[%c0_1, %c0_2] : memref<512x256xbf16, #tpu.memory_space<vmem>>, vector<512x256xbf16>
    %c0_3 = arith.constant 0 : index
    %c0_4 = arith.constant 0 : index
    %3 = vector.load %arg3[%c0_3, %c0_4] : memref<1x256xf32, #tpu.memory_space<vmem>>, vector<1x256xf32>
    %cst = arith.constant dense<0.000000e+00> : vector<256x256xf32>
    %4 = tpu.matmul %1, %2, %cst {dimension_numbers = #tpu.dot_dimension_numbers<[1], [0], [0], [1], [0, 0, 1, 1], [], []>} : vector<256x512xbf16>, vector<512x256xbf16>, vector<256x256xf32> -> vector<256x256xf32>
    %5 = vector.broadcast %3 : vector<1x256xf32> to vector<256x256xf32>
    %6 = arith.addf %4, %5 : vector<256x256xf32>
    %cst_5 = arith.constant 0.000000e+00 : f32
    %7 = vector.broadcast %cst_5 : f32 to vector<256x256xf32>
    %8 = arith.maximumf %6, %7 : vector<256x256xf32>
    %9 = arith.truncf %8 : vector<256x256xf32> to vector<256x256xbf16>
    %c0_6 = arith.constant 0 : index
    %c0_7 = arith.constant 0 : index
    %10 = vector.load %arg4[%c0_6, %c0_7] : memref<256x128xbf16, #tpu.memory_space<vmem>>, vector<256x128xbf16>
    %c0_8 = arith.constant 0 : index
    %c0_9 = arith.constant 0 : index
    %11 = vector.load %arg5[%c0_8, %c0_9] : memref<1x128xf32, #tpu.memory_space<vmem>>, vector<1x128xf32>
    %cst_10 = arith.constant dense<0.000000e+00> : vector<256x128xf32>
    %12 = tpu.matmul %9, %10, %cst_10 {dimension_numbers = #tpu.dot_dimension_numbers<[1], [0], [0], [1], [0, 0, 1, 1], [], []>} : vector<256x256xbf16>, vector<256x128xbf16>, vector<256x128xf32> -> vector<256x128xf32>
    %13 = vector.broadcast %11 : vector<1x128xf32> to vector<256x128xf32>
    %14 = arith.addf %12, %13 : vector<256x128xf32>
    %15 = arith.truncf %14 : vector<256x128xf32> to vector<256x128xbf16>
    %c0_11 = arith.constant 0 : index
    %c0_12 = arith.constant 0 : index
    %16 = vector.load %arg6[%c0_11, %c0_12] : memref<256x128xbf16, #tpu.memory_space<vmem>>, vector<256x128xbf16>
    tpu.vector_store %arg6[%c0_11, %c0_12], %15 {strides = array<i32>} : memref<256x128xbf16, #tpu.memory_space<vmem>>, vector<256x128xbf16>,
    return
  }
  func.func @transform_0(%arg0: i32) -> (i32, i32) {
    %c0_i32 = arith.constant 0 : i32
    %c0_i32_0 = arith.constant 0 : i32
    return %arg0, %c0_i32 : i32, i32
  }
  func.func @transform_1(%arg0: i32) -> (i32, i32) {
    %c0_i32 = arith.constant 0 : i32
    %c0_i32_0 = arith.constant 0 : i32
    %c0_i32_1 = arith.constant 0 : i32
    return %c0_i32, %c0_i32_0 : i32, i32
  }
  func.func @transform_2(%arg0: i32) -> (i32, i32) {
    %c0_i32 = arith.constant 0 : i32
    %c0_i32_0 = arith.constant 0 : i32
    %c0_i32_1 = arith.constant 0 : i32
    return %c0_i32, %c0_i32_0 : i32, i32
  }
  func.func @transform_3(%arg0: i32) -> (i32, i32) {
    %c0_i32 = arith.constant 0 : i32
    %c0_i32_0 = arith.constant 0 : i32
    %c0_i32_1 = arith.constant 0 : i32
    return %c0_i32, %c0_i32_0 : i32, i32
  }
  func.func @transform_4(%arg0: i32) -> (i32, i32) {
    %c0_i32 = arith.constant 0 : i32
    %c0_i32_0 = arith.constant 0 : i32
    %c0_i32_1 = arith.constant 0 : i32
    return %c0_i32, %c0_i32_0 : i32, i32
  }
  func.func @transform_5(%arg0: i32) -> (i32, i32) {
    %c0_i32 = arith.constant 0 : i32
    %c0_i32_0 = arith.constant 0 : i32
    return %arg0, %c0_i32 : i32, i32
  }
}

</mosaic_0001>

<llo_original>
// kernel: tpu_custom_call.1
$region0: #{tpu_custom_call.1}
  #allocation0 [shape = 'u32[]', space=smem, size = 0x4, offset = 0x4, fixed_abs, tag = 'smem constant byte address 0x4 - core index']
  #allocation1 [shape = 'u32[144,128]{1,0:T(1,128)}', space=vmem, size = 0x12000, scoped, tag = 'internal scratch']
  %s0 = inlined_call_operand.hbm [shape: f32[512,512], index: 0, kind: input, shape index: {}]
  %s1 = inlined_call_operand.hbm [shape: bf16[512,256], index: 1, kind: input, shape index: {}]
  %s2 = inlined_call_operand.vmem [shape: f32[1,256], index: 2, kind: input, shape index: {}]
  %s3 = inlined_call_operand.hbm [shape: bf16[256,128], index: 3, kind: input, shape index: {}]
  %s4 = inlined_call_operand.vmem [shape: f32[1,128], index: 4, kind: input, shape index: {}]
  %s5 = inlined_call_operand.hbm [shape: bf16[512,128], index: 5, kind: output, shape index: {}]
  %s6 = sld [smem:[#allocation0]]
  $region65: #{tpu_custom_call.1} parent=0
    _
  %s8 = ssub.s32 1, %s6
  %s9 = scalar_select 0, %s8, %s6
  $region1: #{tpu_custom_call.1} parent=0
    #allocation2 [shape = 'u8[1048576]{0}', space=vmem, size = 0x100000, scoped, tag = 'input window, operand 0']
    #allocation3 [shape = 's32[2]{0}', space=sflag, size = 0x8, scoped, tag = 'scoped memory for tpu_custom_call.1']
    #allocation4 [shape = 's32[2]{0}', space=sflag, size = 0x8, scoped, tag = 'scoped memory for tpu_custom_call.1']
    #allocation5 [shape = 'u8[262144]{0}', space=vmem, size = 0x40000, scoped, tag = 'input window, operand 1, single buffered']
    #allocation6 [shape = 's32[1]{0}', space=sflag, size = 0x4, scoped, tag = 'scoped memory for tpu_custom_call.1']
    #allocation7 [shape = 'u8[65536]{0}', space=vmem, size = 0x10000, scoped, tag = 'input window, operand 3, single buffered']
    #allocation8 [shape = 'u8[131072]{0}', space=vmem, size = 0x20000, scoped, tag = 'output window, operand 0']
    %10 = vsyncpa [#allocation3], 0
    %s11 = scalar_lea.sflag [#allocation3], 1
    %12 = vsyncpa %s11, 0
    %13 = vsyncpa [#allocation6], 0
    %14 = vsyncpa [#allocation4], 0
    %s15 = scalar_lea.sflag [#allocation4], 1
    %16 = vsyncpa %s15, 0
    loop: start=0, step=1, limit=4
    $region2: #{tpu_custom_call.1} parent=1 // loop_pre_header
      _
    $region3: #{tpu_custom_call.1} parent=1 // loop_header
      %s18 = sphi 0, %s22
      %p19 = scmp.ge.s32.totalorder %s18, 4
      %s28 = sphi 0, %s30
      %s31 = sphi 0, %s28
      %s32 = sphi 0, %s31
      %s48 = sphi 0, %s32
      %s52 = sphi 0, %s52
      %s54 = sphi 0, %s52
      %s55 = sphi 0, %s54
      %s69 = sphi 0, %s55
      %s73 = sphi 0, %s73
      %s75 = sphi 0, %s73
      %s76 = sphi 0, %s75
      %s90 = sphi 0, %s76
      %s94 = sphi 0, %s94
      %s96 = sphi 0, %s94
      %s97 = sphi 0, %s96
      %s111 = sphi 0, %s97
      %s115 = sphi 0, %s115
      %s117 = sphi 0, %s115
      %s118 = sphi 0, %s117
      %s132 = sphi 0, %s118
      %s138 = sphi 0, %s140
      %s141 = sphi 0, %s138
      %s142 = sphi 0, %s141
      %s158 = sphi 0, %s142
    $region4: #{tpu_custom_call.1} parent=1 // loop_header_branch
      %21 = sbr.rel (%p19) target = $region8
    $region5: #{tpu_custom_call.1} parent=1 // loop_body
      %s23 = ssub.s32 %s18, 1
      %s24 = ssub.s32 %s18, 2
      %s25 = sadd.s32 %s18, 1
      %s26 = ssub.s32 %s18, %s25
      %p27 = scmp.eq.s32.totalorder %s26, 0
      %s29 = sadd.s32 %s28, 1
      %s30 = scalar_select %p27, %s28, %s29
      %p33 = pneg %p27
      %p34 = scmp.eq.s32.totalorder %s18, 1
      %p35 = por %p33, %p34
      %p36 = scmp.ne.s32.totalorder %s28, %s31
      %p37 = scmp.eq.s32.totalorder %s18, 0
      %p38 = por %p36, %p37
      %p39 = scmp.ne.s32.totalorder %s28, %s31
      %p40 = scmp.eq.s32.totalorder %s23, 1
      %p41 = por %p39, %p40
      %p42 = scmp.ne.s32.totalorder %s31, %s32
      %p43 = scmp.eq.s32.totalorder %s23, 0
      %p44 = por %p42, %p43
      %p45 = scmp.ne.s32.totalorder %s31, %s32
      %p46 = scmp.eq.s32.totalorder %s24, 1
      %p47 = por %p45, %p46
      %p49 = scmp.ne.s32.totalorder %s32, %s48
      %p50 = scmp.eq.s32.totalorder %s24, 0
      %p51 = por %p49, %p50
      %s53 = sadd.s32 %s52, 1
      %p56 = scmp.eq.s32.totalorder %s18, 1
      %p57 = scmp.ne.s32.totalorder %s52, %s54
      %p58 = scmp.eq.s32.totalorder %s18, 0
      %p59 = por %p57, %p58
      %p60 = scmp.ne.s32.totalorder %s52, %s54
      %p61 = scmp.eq.s32.totalorder %s23, 1
      %p62 = por %p60, %p61
      %p63 = scmp.ne.s32.totalorder %s54, %s55
      %p64 = scmp.eq.s32.totalorder %s23, 0
      %p65 = por %p63, %p64
      %p66 = scmp.ne.s32.totalorder %s54, %s55
      %p67 = scmp.eq.s32.totalorder %s24, 1
      %p68 = por %p66, %p67
      %p70 = scmp.ne.s32.totalorder %s55, %s69
      %p71 = scmp.eq.s32.totalorder %s24, 0
      %p72 = por %p70, %p71
      %s74 = sadd.s32 %s73, 1
      %p77 = scmp.eq.s32.totalorder %s18, 1
      %p78 = scmp.ne.s32.totalorder %s73, %s75
      %p79 = scmp.eq.s32.totalorder %s18, 0
      %p80 = por %p78, %p79
      %p81 = scmp.ne.s32.totalorder %s73, %s75
      %p82 = scmp.eq.s32.totalorder %s23, 1
      %p83 = por %p81, %p82
      %p84 = scmp.ne.s32.totalorder %s75, %s76
      %p85 = scmp.eq.s32.totalorder %s23, 0
      %p86 = por %p84, %p85
      %p87 = scmp.ne.s32.totalorder %s75, %s76
      %p88 = scmp.eq.s32.totalorder %s24, 1
      %p89 = por %p87, %p88
      %p91 = scmp.ne.s32.totalorder %s76, %s90
      %p92 = scmp.eq.s32.totalorder %s24, 0
      %p93 = por %p91, %p92
      %s95 = sadd.s32 %s94, 1
      %p98 = scmp.eq.s32.totalorder %s18, 1
      %p99 = scmp.ne.s32.totalorder %s94, %s96
      %p100 = scmp.eq.s32.totalorder %s18, 0
      %p101 = por %p99, %p100
      %p102 = scmp.ne.s32.totalorder %s94, %s96
      %p103 = scmp.eq.s32.totalorder %s23, 1
      %p104 = por %p102, %p103
      %p105 = scmp.ne.s32.totalorder %s96, %s97
      %p106 = scmp.eq.s32.totalorder %s23, 0
      %p107 = por %p105, %p106
      %p108 = scmp.ne.s32.totalorder %s96, %s97
      %p109 = scmp.eq.s32.totalorder %s24, 1
      %p110 = por %p108, %p109
      %p112 = scmp.ne.s32.totalorder %s97, %s111
      %p113 = scmp.eq.s32.totalorder %s24, 0
      %p114 = por %p112, %p113
      %s116 = sadd.s32 %s115, 1
      %p119 = scmp.eq.s32.totalorder %s18, 1
      %p120 = scmp.ne.s32.totalorder %s115, %s117
      %p121 = scmp.eq.s32.totalorder %s18, 0
      %p122 = por %p120, %p121
      %p123 = scmp.ne.s32.totalorder %s115, %s117
      %p124 = scmp.eq.s32.totalorder %s23, 1
      %p125 = por %p123, %p124
      %p126 = scmp.ne.s32.totalorder %s117, %s118
      %p127 = scmp.eq.s32.totalorder %s23, 0
      %p128 = por %p126, %p127
      %p129 = scmp.ne.s32.totalorder %s117, %s118
      %p130 = scmp.eq.s32.totalorder %s24, 1
      %p131 = por %p129, %p130
      %p133 = scmp.ne.s32.totalorder %s118, %s132
      %p134 = scmp.eq.s32.totalorder %s24, 0
      %p135 = por %p133, %p134
      %s136 = ssub.s32 %s18, %s25
      %p137 = scmp.eq.s32.totalorder %s136, 0
      %s139 = sadd.s32 %s138, 1
      %s140 = scalar_select %p137, %s138, %s139
      %p143 = pneg %p137
      %p144 = scmp.eq.s32.totalorder %s18, 1
      %p145 = por %p143, %p144
      %p146 = scmp.ne.s32.totalorder %s138, %s141
      %p147 = scmp.eq.s32.totalorder %s18, 0
      %p148 = por %p146, %p147
      %p149 = scmp.ne.s32.totalorder %s138, %s141
      %p150 = scmp.eq.s32.totalorder %s23, 1
      %p151 = por %p149, %p150
      %p152 = scmp.ne.s32.totalorder %s141, %s142
      %p153 = scmp.eq.s32.totalorder %s23, 0
      %p154 = por %p152, %p153
      %p155 = scmp.ne.s32.totalorder %s141, %s142
      %p156 = scmp.eq.s32.totalorder %s24, 1
      %p157 = por %p155, %p156
      %p159 = scmp.ne.s32.totalorder %s142, %s158
      %p160 = scmp.eq.s32.totalorder %s24, 0
      %p161 = por %p159, %p160
      %p162 = scmp.le.s32.totalorder 1, %s18
      %p163 = scmp.lt.s32.totalorder %s18, 3
      %p164 = pnand %p162, %p163
      %p165 = pneg %p164
      // Predicated region
      $region9: #{tpu_custom_call.1} parent=5 // pred_check
        _
      $region10: #{tpu_custom_call.1} parent=5 // pred_check_branch
        %167 = sbr.rel (%p164) target = $region12
      $region11: #{tpu_custom_call.1} parent=5 // pred_region
        %s168 = ssub.s32 %s18, 1
        // Predicated region
        $region13: #{tpu_custom_call.1} parent=11 // pred_check
          %p169 = pneg %p65
        $region14: #{tpu_custom_call.1} parent=11 // pred_check_branch
          %171 = sbr.rel (%p169) target = $region16
        $region15: #{tpu_custom_call.1} parent=11 // pred_region
          %s173 = ssub.s32 8192, 8192
          %174 = vsyncadd [#allocation6], %s173
          %s175 = sshll.u32 [#allocation5], 4
          %s176 = int_to_ptr.vmem [resolvable:$true] %s175
          %181 = dma.hbm_to_vmem [thread:$0]  %s1, 8192, %s176, [#allocation6], 128, 128, 8
        $region16: #{tpu_custom_call.1} parent=11 // pred_fallthru
          _
        // Predicated region
        $region17: #{tpu_custom_call.1} parent=11 // pred_check
          %p182 = pneg %p86
        $region18: #{tpu_custom_call.1} parent=11 // pred_check_branch
          %184 = sbr.rel (%p182) target = $region20
        $region19: #{tpu_custom_call.1} parent=11 // pred_region
          _
        $region20: #{tpu_custom_call.1} parent=11 // pred_fallthru
          _
        // Predicated region
        $region21: #{tpu_custom_call.1} parent=11 // pred_check
          %p185 = pneg %p107
        $region22: #{tpu_custom_call.1} parent=11 // pred_check_branch
          %187 = sbr.rel (%p185) target = $region24
        $region23: #{tpu_custom_call.1} parent=11 // pred_region
          %s189 = ssub.s32 2048, 2048
          %190 = vsyncadd [#allocation6], %s189
          %s191 = sshll.u32 [#allocation7], 4
          %s192 = int_to_ptr.vmem [resolvable:$true] %s191
          %197 = dma.hbm_to_vmem [thread:$0]  %s3, 2048, %s192, [#allocation6], 64, 64, 4
        $region24: #{tpu_custom_call.1} parent=11 // pred_fallthru
          _
        // Predicated region
        $region25: #{tpu_custom_call.1} parent=11 // pred_check
          %p198 = pneg %p128
        $region26: #{tpu_custom_call.1} parent=11 // pred_check_branch
          %200 = sbr.rel (%p198) target = $region28
        $region27: #{tpu_custom_call.1} parent=11 // pred_region
          _
        $region28: #{tpu_custom_call.1} parent=11 // pred_fallthru
          _
      $region12: #{tpu_custom_call.1} parent=5 // pred_fallthru
        _
      %p201 = scmp.lt.s32.totalorder %s18, 2
      // Predicated region
      $region29: #{tpu_custom_call.1} parent=5 // pred_check
        %p202 = pneg %p201
      $region30: #{tpu_custom_call.1} parent=5 // pred_check_branch
        %204 = sbr.rel (%p202) target = $region32
      $region31: #{tpu_custom_call.1} parent=5 // pred_region
        // Predicated region
        $region33: #{tpu_custom_call.1} parent=31 // pred_check
          %p205 = pneg %p38
        $region34: #{tpu_custom_call.1} parent=31 // pred_check_branch
          %207 = sbr.rel (%p205) target = $region36
        $region35: #{tpu_custom_call.1} parent=31 // pred_region
          %s208 = sand.u32 %s28, 1
          %s209 = scalar_lea.sflag [#allocation3], %s208
          %s210 = sand.u32 %s28, 1
          %s211 = smul.addr %s210, 1024
          %s212 = scalar_lea.vmem [#allocation2], %s211
          %s213 = smul.u32 32, %s18
          %s215 = ssub.s32 16384, 16384
          %216 = vsyncadd %s209, %s215
          %s217 = smul.addr %s213, 4
          %s218 = smul.addr %s217, 128
          %s219 = scalar_lea.hbm %s0, %s218
          %s220 = sshll.u32 %s212, 4
          %s221 = int_to_ptr.vmem [resolvable:$true] %s220
          %226 = dma.hbm_to_vmem [thread:$0]  %s219, 16384, %s221, %s209, 512, 512, 32
        $region36: #{tpu_custom_call.1} parent=31 // pred_fallthru
          _
      $region32: #{tpu_custom_call.1} parent=5 // pred_fallthru
        _
      %p227 = scmp.le.s32.totalorder 1, %s18
      %p228 = scmp.lt.s32.totalorder %s18, 3
      %p229 = pnand %p227, %p228
      %p230 = pneg %p229
      // Predicated region
      $region37: #{tpu_custom_call.1} parent=5 // pred_check
        _
      $region38: #{tpu_custom_call.1} parent=5 // pred_check_branch
        %232 = sbr.rel (%p229) target = $region40
      $region39: #{tpu_custom_call.1} parent=5 // pred_region
        %s233 = ssub.s32 %s18, 1
        %s234 = sand.u32 %s31, 1
        %s235 = scalar_lea.sflag [#allocation3], %s234
        %s236 = sand.u32 %s31, 1
        %s237 = smul.addr %s236, 1024
        %s238 = scalar_lea.vmem [#allocation2], %s237
        // Predicated region
        $region41: #{tpu_custom_call.1} parent=39 // pred_check
          %p239 = pneg %p44
        $region42: #{tpu_custom_call.1} parent=39 // pred_check_branch
          %241 = sbr.rel (%p239) target = $region44
        $region43: #{tpu_custom_call.1} parent=39 // pred_region
          %242 = dma.done %s235, 16384
        $region44: #{tpu_custom_call.1} parent=39 // pred_fallthru
          _
        // Predicated region
        $region45: #{tpu_custom_call.1} parent=39 // pred_check
          %p243 = pneg %p65
        $region46: #{tpu_custom_call.1} parent=39 // pred_check_branch
          %245 = sbr.rel (%p243) target = $region48
        $region47: #{tpu_custom_call.1} parent=39 // pred_region
          %246 = dma.done [#allocation6], 8192
        $region48: #{tpu_custom_call.1} parent=39 // pred_fallthru
          _
        // Predicated region
        $region49: #{tpu_custom_call.1} parent=39 // pred_check
          %p247 = pneg %p107
        $region50: #{tpu_custom_call.1} parent=39 // pred_check_branch
          %249 = sbr.rel (%p247) target = $region52
        $region51: #{tpu_custom_call.1} parent=39 // pred_region
          %250 = dma.done [#allocation6], 2048
        $region52: #{tpu_custom_call.1} parent=39 // pred_fallthru
          _
        %s251 = sand.u32 %s31, 1
        %s252 = scalar_lea.sflag [#allocation3], %s251
        %s253 = sand.u32 %s31, 1
        %s254 = smul.addr %s253, 1024
        %s255 = scalar_lea.vmem [#allocation2], %s254
        %p256 = pneg %p44
        %p257 = pneg %p41
        %p258 = pneg %p65
        %p259 = pneg %p62
        %p260 = pneg %p86
        %p261 = pneg %p83
        %p262 = pneg %p107
        %p263 = pneg %p104
        %p264 = pneg %p128
        %p265 = pneg %p125
        %p266 = pneg %p154
        %p267 = pneg %p151
        %s268 = sand.u32 %s141, 1
        %s269 = scalar_lea.sflag [#allocation4], %s268
        %s270 = sand.u32 %s141, 1
        %s271 = smul.addr %s270, 128
        %s272 = scalar_lea.vmem [#allocation8], %s271
        %s273 = smul.u32 32, %s23
        %s274 = smul.u32 32, %s23
        %v276 = vld [vmem:[%s238] sm:$0xff]
        %v277 = vld [vmem:[%s238 + $0x8] sm:$0xff]
        %v278 = vld [vmem:[%s238 + $0x10] sm:$0xff]
        %v279 = vld [vmem:[%s238 + $0x18] sm:$0xff]
        %v280 = vld [vmem:[%s238 + $0x20] sm:$0xff]
        %v281 = vld [vmem:[%s238 + $0x28] sm:$0xff]
        %v282 = vld [vmem:[%s238 + $0x30] sm:$0xff]
        %v283 = vld [vmem:[%s238 + $0x38] sm:$0xff]
        %v284 = vld [vmem:[%s238 + $0x40] sm:$0xff]
        %v285 = vld [vmem:[%s238 + $0x48] sm:$0xff]
        %v286 = vld [vmem:[%s238 + $0x50] sm:$0xff]
        %v287 = vld [vmem:[%s238 + $0x58] sm:$0xff]
        %v288 = vld [vmem:[%s238 + $0x60] sm:$0xff]
        %v289 = vld [vmem:[%s238 + $0x68] sm:$0xff]
        %v290 = vld [vmem:[%s238 + $0x70] sm:$0xff]
        %v291 = vld [vmem:[%s238 + $0x78] sm:$0xff]
        %v292 = vld [vmem:[%s238 + $0x80] sm:$0xff]
        %v293 = vld [vmem:[%s238 + $0x88] sm:$0xff]
        %v294 = vld [vmem:[%s238 + $0x90] sm:$0xff]
        %v295 = vld [vmem:[%s238 + $0x98] sm:$0xff]
        %v296 = vld [vmem:[%s238 + $0xa0] sm:$0xff]
        %v297 = vld [vmem:[%s238 + $0xa8] sm:$0xff]
        %v298 = vld [vmem:[%s238 + $0xb0] sm:$0xff]
        %v299 = vld [vmem:[%s238 + $0xb8] sm:$0xff]
        %v300 = vld [vmem:[%s238 + $0xc0] sm:$0xff]
        %v301 = vld [vmem:[%s238 + $0xc8] sm:$0xff]
        %v302 = vld [vmem:[%s238 + $0xd0] sm:$0xff]
        %v303 = vld [vmem:[%s238 + $0xd8] sm:$0xff]
        %v304 = vld [vmem:[%s238 + $0xe0] sm:$0xff]
        %v305 = vld [vmem:[%s238 + $0xe8] sm:$0xff]
        %v306 = vld [vmem:[%s238 + $0xf0] sm:$0xff]
        %v307 = vld [vmem:[%s238 + $0xf8] sm:$0xff]
        %v308 = vld [vmem:[%s238 + $0x100] sm:$0xff]
        %v309 = vld [vmem:[%s238 + $0x108] sm:$0xff]
        %v310 = vld [vmem:[%s238 + $0x110] sm:$0xff]
        %v311 = vld [vmem:[%s238 + $0x118] sm:$0xff]
        %v312 = vld [vmem:[%s238 + $0x120] sm:$0xff]
        %v313 = vld [vmem:[%s238 + $0x128] sm:$0xff]
        %v314 = vld [vmem:[%s238 + $0x130] sm:$0xff]
        %v315 = vld [vmem:[%s238 + $0x138] sm:$0xff]
        %v316 = vld [vmem:[%s238 + $0x140] sm:$0xff]
        %v317 = vld [vmem:[%s238 + $0x148] sm:$0xff]
        %v318 = vld [vmem:[%s238 + $0x150] sm:$0xff]
        %v319 = vld [vmem:[%s238 + $0x158] sm:$0xff]
        %v320 = vld [vmem:[%s238 + $0x160] sm:$0xff]
        %v321 = vld [vmem:[%s238 + $0x168] sm:$0xff]
        %v322 = vld [vmem:[%s238 + $0x170] sm:$0xff]
        %v323 = vld [vmem:[%s238 + $0x178] sm:$0xff]
        %v324 = vld [vmem:[%s238 + $0x180] sm:$0xff]
        %v325 = vld [vmem:[%s238 + $0x188] sm:$0xff]
        %v326 = vld [vmem:[%s238 + $0x190] sm:$0xff]
        %v327 = vld [vmem:[%s238 + $0x198] sm:$0xff]
        %v328 = vld [vmem:[%s238 + $0x1a0] sm:$0xff]
        %v329 = vld [vmem:[%s238 + $0x1a8] sm:$0xff]
        %v330 = vld [vmem:[%s238 + $0x1b0] sm:$0xff]
        %v331 = vld [vmem:[%s238 + $0x1b8] sm:$0xff]
        %v332 = vld [vmem:[%s238 + $0x1c0] sm:$0xff]
        %v333 = vld [vmem:[%s238 + $0x1c8] sm:$0xff]
        %v334 = vld [vmem:[%s238 + $0x1d0] sm:$0xff]
        %v335 = vld [vmem:[%s238 + $0x1d8] sm:$0xff]
        %v336 = vld [vmem:[%s238 + $0x1e0] sm:$0xff]
        %v337 = vld [vmem:[%s238 + $0x1e8] sm:$0xff]
        %v338 = vld [vmem:[%s238 + $0x1f0] sm:$0xff]
        %v339 = vld [vmem:[%s238 + $0x1f8] sm:$0xff]
        %v340 = vld [vmem:[%s238 + $0x200] sm:$0xff]
        %v341 = vld [vmem:[%s238 + $0x208] sm:$0xff]
        %v342 = vld [vmem:[%s238 + $0x210] sm:$0xff]
        %v343 = vld [vmem:[%s238 + $0x218] sm:$0xff]
        %v344 = vld [vmem:[%s238 + $0x220] sm:$0xff]
        %v345 = vld [vmem:[%s238 + $0x228] sm:$0xff]
        %v346 = vld [vmem:[%s238 + $0x230] sm:$0xff]
        %v347 = vld [vmem:[%s238 + $0x238] sm:$0xff]
        %v348 = vld [vmem:[%s238 + $0x240] sm:$0xff]
        %v349 = vld [vmem:[%s238 + $0x248] sm:$0xff]
        %v350 = vld [vmem:[%s238 + $0x250] sm:$0xff]
        %v351 = vld [vmem:[%s238 + $0x258] sm:$0xff]
        %v352 = vld [vmem:[%s238 + $0x260] sm:$0xff]
        %v353 = vld [vmem:[%s238 + $0x268] sm:$0xff]
        %v354 = vld [vmem:[%s238 + $0x270] sm:$0xff]
        %v355 = vld [vmem:[%s238 + $0x278] sm:$0xff]
        %v356 = vld [vmem:[%s238 + $0x280] sm:$0xff]
        %v357 = vld [vmem:[%s238 + $0x288] sm:$0xff]
        %v358 = vld [vmem:[%s238 + $0x290] sm:$0xff]
        %v359 = vld [vmem:[%s238 + $0x298] sm:$0xff]
        %v360 = vld [vmem:[%s238 + $0x2a0] sm:$0xff]
        %v361 = vld [vmem:[%s238 + $0x2a8] sm:$0xff]
        %v362 = vld [vmem:[%s238 + $0x2b0] sm:$0xff]
        %v363 = vld [vmem:[%s238 + $0x2b8] sm:$0xff]
        %v364 = vld [vmem:[%s238 + $0x2c0] sm:$0xff]
        %v365 = vld [vmem:[%s238 + $0x2c8] sm:$0xff]
        %v366 = vld [vmem:[%s238 + $0x2d0] sm:$0xff]
        %v367 = vld [vmem:[%s238 + $0x2d8] sm:$0xff]
        %v368 = vld [vmem:[%s238 + $0x2e0] sm:$0xff]
        %v369 = vld [vmem:[%s238 + $0x2e8] sm:$0xff]
        %v370 = vld [vmem:[%s238 + $0x2f0] sm:$0xff]
        %v371 = vld [vmem:[%s238 + $0x2f8] sm:$0xff]
        %v372 = vld [vmem:[%s238 + $0x300] sm:$0xff]
        %v373 = vld [vmem:[%s238 + $0x308] sm:$0xff]
        %v374 = vld [vmem:[%s238 + $0x310] sm:$0xff]
        %v375 = vld [vmem:[%s238 + $0x318] sm:$0xff]
        %v376 = vld [vmem:[%s238 + $0x320] sm:$0xff]
        %v377 = vld [vmem:[%s238 + $0x328] sm:$0xff]
        %v378 = vld [vmem:[%s238 + $0x330] sm:$0xff]
        %v379 = vld [vmem:[%s238 + $0x338] sm:$0xff]
        %v380 = vld [vmem:[%s238 + $0x340] sm:$0xff]
        %v381 = vld [vmem:[%s238 + $0x348] sm:$0xff]
        %v382 = vld [vmem:[%s238 + $0x350] sm:$0xff]
        %v383 = vld [vmem:[%s238 + $0x358] sm:$0xff]
        %v384 = vld [vmem:[%s238 + $0x360] sm:$0xff]
        %v385 = vld [vmem:[%s238 + $0x368] sm:$0xff]
        %v386 = vld [vmem:[%s238 + $0x370] sm:$0xff]
        %v387 = vld [vmem:[%s238 + $0x378] sm:$0xff]
        %v388 = vld [vmem:[%s238 + $0x380] sm:$0xff]
        %v389 = vld [vmem:[%s238 + $0x388] sm:$0xff]
        %v390 = vld [vmem:[%s238 + $0x390] sm:$0xff]
        %v391 = vld [vmem:[%s238 + $0x398] sm:$0xff]
        %v392 = vld [vmem:[%s238 + $0x3a0] sm:$0xff]
        %v393 = vld [vmem:[%s238 + $0x3a8] sm:$0xff]
        %v394 = vld [vmem:[%s238 + $0x3b0] sm:$0xff]
        %v395 = vld [vmem:[%s238 + $0x3b8] sm:$0xff]
        %v396 = vld [vmem:[%s238 + $0x3c0] sm:$0xff]
        %v397 = vld [vmem:[%s238 + $0x3c8] sm:$0xff]
        %v398 = vld [vmem:[%s238 + $0x3d0] sm:$0xff]
        %v399 = vld [vmem:[%s238 + $0x3d8] sm:$0xff]
        %v400 = vld [vmem:[%s238 + $0x3e0] sm:$0xff]
        %v401 = vld [vmem:[%s238 + $0x3e8] sm:$0xff]
        %v402 = vld [vmem:[%s238 + $0x3f0] sm:$0xff]
        %v403 = vld [vmem:[%s238 + $0x3f8] sm:$0xff]
        %v404 = vpack.c.bf16 %v280, %v276
        %v405 = vpack.c.bf16 %v281, %v277
        %v406 = vpack.c.bf16 %v282, %v278
        %v407 = vpack.c.bf16 %v283, %v279
        %v408 = vpack.c.bf16 %v288, %v284
        %v409 = vpack.c.bf16 %v289, %v285
        %v410 = vpack.c.bf16 %v290, %v286
        %v411 = vpack.c.bf16 %v291, %v287
        %v412 = vpack.c.bf16 %v296, %v292
        %v413 = vpack.c.bf16 %v297, %v293
        %v414 = vpack.c.bf16 %v298, %v294
        %v415 = vpack.c.bf16 %v299, %v295
        %v416 = vpack.c.bf16 %v304, %v300
        %v417 = vpack.c.bf16 %v305, %v301
        %v418 = vpack.c.bf16 %v306, %v302
        %v419 = vpack.c.bf16 %v307, %v303
        %v420 = vpack.c.bf16 %v312, %v308
        %v421 = vpack.c.bf16 %v313, %v309
        %v422 = vpack.c.bf16 %v314, %v310
        %v423 = vpack.c.bf16 %v315, %v311
        %v424 = vpack.c.bf16 %v320, %v316
        %v425 = vpack.c.bf16 %v321, %v317
        %v426 = vpack.c.bf16 %v322, %v318
        %v427 = vpack.c.bf16 %v323, %v319
        %v428 = vpack.c.bf16 %v328, %v324
        %v429 = vpack.c.bf16 %v329, %v325
        %v430 = vpack.c.bf16 %v330, %v326
        %v431 = vpack.c.bf16 %v331, %v327
        %v432 = vpack.c.bf16 %v336, %v332
        %v433 = vpack.c.bf16 %v337, %v333
        %v434 = vpack.c.bf16 %v338, %v334
        %v435 = vpack.c.bf16 %v339, %v335
        %v436 = vpack.c.bf16 %v344, %v340
        %v437 = vpack.c.bf16 %v345, %v341
        %v438 = vpack.c.bf16 %v346, %v342
        %v439 = vpack.c.bf16 %v347, %v343
        %v440 = vpack.c.bf16 %v352, %v348
        %v441 = vpack.c.bf16 %v353, %v349
        %v442 = vpack.c.bf16 %v354, %v350
        %v443 = vpack.c.bf16 %v355, %v351
        %v444 = vpack.c.bf16 %v360, %v356
        %v445 = vpack.c.bf16 %v361, %v357
        %v446 = vpack.c.bf16 %v362, %v358
        %v447 = vpack.c.bf16 %v363, %v359
        %v448 = vpack.c.bf16 %v368, %v364
        %v449 = vpack.c.bf16 %v369, %v365
        %v450 = vpack.c.bf16 %v370, %v366
        %v451 = vpack.c.bf16 %v371, %v367
        %v452 = vpack.c.bf16 %v376, %v372
        %v453 = vpack.c.bf16 %v377, %v373
        %v454 = vpack.c.bf16 %v378, %v374
        %v455 = vpack.c.bf16 %v379, %v375
        %v456 = vpack.c.bf16 %v384, %v380
        %v457 = vpack.c.bf16 %v385, %v381
        %v458 = vpack.c.bf16 %v386, %v382
        %v459 = vpack.c.bf16 %v387, %v383
        %v460 = vpack.c.bf16 %v392, %v388
        %v461 = vpack.c.bf16 %v393, %v389
        %v462 = vpack.c.bf16 %v394, %v390
        %v463 = vpack.c.bf16 %v395, %v391
        %v464 = vpack.c.bf16 %v400, %v396
        %v465 = vpack.c.bf16 %v401, %v397
        %v466 = vpack.c.bf16 %v402, %v398
        %v467 = vpack.c.bf16 %v403, %v399
        %v468 = vld [vmem:[#allocation5] sm:$0xff]
        %v469 = vld [vmem:[#allocation5 + $0x8] sm:$0xff]
        %v470 = vld [vmem:[#allocation5 + $0x10] sm:$0xff]
        %v471 = vld [vmem:[#allocation5 + $0x18] sm:$0xff]
        %v472 = vld [vmem:[#allocation5 + $0x20] sm:$0xff]
        %v473 = vld [vmem:[#allocation5 + $0x28] sm:$0xff]
        %v474 = vld [vmem:[#allocation5 + $0x30] sm:$0xff]
        %v475 = vld [vmem:[#allocation5 + $0x38] sm:$0xff]
        %v476 = vld [vmem:[#allocation5 + $0x40] sm:$0xff]
        %v477 = vld [vmem:[#allocation5 + $0x48] sm:$0xff]
        %v478 = vld [vmem:[#allocation5 + $0x50] sm:$0xff]
        %v479 = vld [vmem:[#allocation5 + $0x58] sm:$0xff]
        %v480 = vld [vmem:[#allocation5 + $0x60] sm:$0xff]
        %v481 = vld [vmem:[#allocation5 + $0x68] sm:$0xff]
        %v482 = vld [vmem:[#allocation5 + $0x70] sm:$0xff]
        %v483 = vld [vmem:[#allocation5 + $0x78] sm:$0xff]
        %v484 = vld [vmem:[#allocation5 + $0x80] sm:$0xff]
        %v485 = vld [vmem:[#allocation5 + $0x88] sm:$0xff]
        %v486 = vld [vmem:[#allocation5 + $0x90] sm:$0xff]
        %v487 = vld [vmem:[#allocation5 + $0x98] sm:$0xff]
        %v488 = vld [vmem:[#allocation5 + $0xa0] sm:$0xff]
        %v489 = vld [vmem:[#allocation5 + $0xa8] sm:$0xff]
        %v490 = vld [vmem:[#allocation5 + $0xb0] sm:$0xff]
        %v491 = vld [vmem:[#allocation5 + $0xb8] sm:$0xff]
        %v492 = vld [vmem:[#allocation5 + $0xc0] sm:$0xff]
        %v493 = vld [vmem:[#allocation5 + $0xc8] sm:$0xff]
        %v494 = vld [vmem:[#allocation5 + $0xd0] sm:$0xff]
        %v495 = vld [vmem:[#allocation5 + $0xd8] sm:$0xff]
        %v496 = vld [vmem:[#allocation5 + $0xe0] sm:$0xff]
        %v497 = vld [vmem:[#allocation5 + $0xe8] sm:$0xff]
        %v498 = vld [vmem:[#allocation5 + $0xf0] sm:$0xff]
        %v499 = vld [vmem:[#allocation5 + $0xf8] sm:$0xff]
        %v500 = vld [vmem:[#allocation5 + $0x100] sm:$0xff]
        %v501 = vld [vmem:[#allocation5 + $0x108] sm:$0xff]
        %v502 = vld [vmem:[#allocation5 + $0x110] sm:$0xff]
        %v503 = vld [vmem:[#allocation5 + $0x118] sm:$0xff]
        %v504 = vld [vmem:[#allocation5 + $0x120] sm:$0xff]
        %v505 = vld [vmem:[#allocation5 + $0x128] sm:$0xff]
        %v506 = vld [vmem:[#allocation5 + $0x130] sm:$0xff]
        %v507 = vld [vmem:[#allocation5 + $0x138] sm:$0xff]
        %v508 = vld [vmem:[#allocation5 + $0x140] sm:$0xff]
        %v509 = vld [vmem:[#allocation5 + $0x148] sm:$0xff]
        %v510 = vld [vmem:[#allocation5 + $0x150] sm:$0xff]
        %v511 = vld [vmem:[#allocation5 + $0x158] sm:$0xff]
        %v512 = vld [vmem:[#allocation5 + $0x160] sm:$0xff]
        %v513 = vld [vmem:[#allocation5 + $0x168] sm:$0xff]
        %v514 = vld [vmem:[#allocation5 + $0x170] sm:$0xff]
        %v515 = vld [vmem:[#allocation5 + $0x178] sm:$0xff]
        %v516 = vld [vmem:[#allocation5 + $0x180] sm:$0xff]
        %v517 = vld [vmem:[#allocation5 + $0x188] sm:$0xff]
        %v518 = vld [vmem:[#allocation5 + $0x190] sm:$0xff]
        %v519 = vld [vmem:[#allocation5 + $0x198] sm:$0xff]
        %v520 = vld [vmem:[#allocation5 + $0x1a0] sm:$0xff]
        %v521 = vld [vmem:[#allocation5 + $0x1a8] sm:$0xff]
        %v522 = vld [vmem:[#allocation5 + $0x1b0] sm:$0xff]
        %v523 = vld [vmem:[#allocation5 + $0x1b8] sm:$0xff]
        %v524 = vld [vmem:[#allocation5 + $0x1c0] sm:$0xff]
        %v525 = vld [vmem:[#allocation5 + $0x1c8] sm:$0xff]
        %v526 = vld [vmem:[#allocation5 + $0x1d0] sm:$0xff]
        %v527 = vld [vmem:[#allocation5 + $0x1d8] sm:$0xff]
        %v528 = vld [vmem:[#allocation5 + $0x1e0] sm:$0xff]
        %v529 = vld [vmem:[#allocation5 + $0x1e8] sm:$0xff]
        %v530 = vld [vmem:[#allocation5 + $0x1f0] sm:$0xff]
        %v531 = vld [vmem:[#allocation5 + $0x1f8] sm:$0xff]
        %v532 = vld [vmem:[%s2] sm:$0x3]
        %v534 = vlaneseq
        %v535 = vshrl.u32 %v534, 7
        %v536 = vsub.s32 0, %v535
        %v537 = vrot.slane %v532, %v536
        %v538 = vlaneseq
        %v539 = vshrl.u32 %v538, 7
        %v540 = vsub.s32 1, %v539
        %v541 = vrot.slane %v532, %v540
        %v608 = vunpack.c.l.b16 %v468
        %v609 = vunpack.c.h.b16 %v468
        %v610 = vunpack.c.l.b16 %v469
        %v611 = vunpack.c.h.b16 %v469
        %v612 = vunpack.c.l.b16 %v470
        %v613 = vunpack.c.h.b16 %v470
        %v614 = vunpack.c.l.b16 %v471
        %v615 = vunpack.c.h.b16 %v471
        %v616 = vunpack.c.l.b16 %v472
        %v617 = vunpack.c.h.b16 %v472
        %v618 = vunpack.c.l.b16 %v473
        %v619 = vunpack.c.h.b16 %v473
        %v620 = vunpack.c.l.b16 %v474
        %v621 = vunpack.c.h.b16 %v474
        %v622 = vunpack.c.l.b16 %v475
        %v623 = vunpack.c.h.b16 %v475
        %v624 = vunpack.c.l.b16 %v476
        %v625 = vunpack.c.h.b16 %v476
        %v626 = vunpack.c.l.b16 %v477
        %v627 = vunpack.c.h.b16 %v477
        %v628 = vunpack.c.l.b16 %v478
        %v629 = vunpack.c.h.b16 %v478
        %v630 = vunpack.c.l.b16 %v479
        %v631 = vunpack.c.h.b16 %v479
        %v632 = vunpack.c.l.b16 %v480
        %v633 = vunpack.c.h.b16 %v480
        %v634 = vunpack.c.l.b16 %v481
        %v635 = vunpack.c.h.b16 %v481
        %v636 = vunpack.c.l.b16 %v482
        %v637 = vunpack.c.h.b16 %v482
        %v638 = vunpack.c.l.b16 %v483
        %v639 = vunpack.c.h.b16 %v483
        %v640 = vunpack.c.l.b16 %v484
        %v641 = vunpack.c.h.b16 %v484
        %v642 = vunpack.c.l.b16 %v485
        %v643 = vunpack.c.h.b16 %v485
        %v644 = vunpack.c.l.b16 %v486
        %v645 = vunpack.c.h.b16 %v486
        %v646 = vunpack.c.l.b16 %v487
        %v647 = vunpack.c.h.b16 %v487
        %v648 = vunpack.c.l.b16 %v488
        %v649 = vunpack.c.h.b16 %v488
        %v650 = vunpack.c.l.b16 %v489
        %v651 = vunpack.c.h.b16 %v489
        %v652 = vunpack.c.l.b16 %v490
        %v653 = vunpack.c.h.b16 %v490
        %v654 = vunpack.c.l.b16 %v491
        %v655 = vunpack.c.h.b16 %v491
        %v656 = vunpack.c.l.b16 %v492
        %v657 = vunpack.c.h.b16 %v492
        %v658 = vunpack.c.l.b16 %v493
        %v659 = vunpack.c.h.b16 %v493
        %v660 = vunpack.c.l.b16 %v494
        %v661 = vunpack.c.h.b16 %v494
        %v662 = vunpack.c.l.b16 %v495
        %v663 = vunpack.c.h.b16 %v495
        %v664 = vunpack.c.l.b16 %v496
        %v665 = vunpack.c.h.b16 %v496
        %v666 = vunpack.c.l.b16 %v497
        %v667 = vunpack.c.h.b16 %v497
        %v668 = vunpack.c.l.b16 %v498
        %v669 = vunpack.c.h.b16 %v498
        %v670 = vunpack.c.l.b16 %v499
        %v671 = vunpack.c.h.b16 %v499
        %v672 = vunpack.c.l.b16 %v500
        %v673 = vunpack.c.h.b16 %v500
        %v674 = vunpack.c.l.b16 %v501
        %v675 = vunpack.c.h.b16 %v501
        %v676 = vunpack.c.l.b16 %v502
        %v677 = vunpack.c.h.b16 %v502
        %v678 = vunpack.c.l.b16 %v503
        %v679 = vunpack.c.h.b16 %v503
        %v680 = vunpack.c.l.b16 %v504
        %v681 = vunpack.c.h.b16 %v504
        %v682 = vunpack.c.l.b16 %v505
        %v683 = vunpack.c.h.b16 %v505
        %v684 = vunpack.c.l.b16 %v506
        %v685 = vunpack.c.h.b16 %v506
        %v686 = vunpack.c.l.b16 %v507
        %v687 = vunpack.c.h.b16 %v507
        %v688 = vunpack.c.l.b16 %v508
        %v689 = vunpack.c.h.b16 %v508
        %v690 = vunpack.c.l.b16 %v509
        %v691 = vunpack.c.h.b16 %v509
        %v692 = vunpack.c.l.b16 %v510
        %v693 = vunpack.c.h.b16 %v510
        %v694 = vunpack.c.l.b16 %v511
        %v695 = vunpack.c.h.b16 %v511
        %v696 = vunpack.c.l.b16 %v512
        %v697 = vunpack.c.h.b16 %v512
        %v698 = vunpack.c.l.b16 %v513
        %v699 = vunpack.c.h.b16 %v513
        %v700 = vunpack.c.l.b16 %v514
        %v701 = vunpack.c.h.b16 %v514
        %v702 = vunpack.c.l.b16 %v515
        %v703 = vunpack.c.h.b16 %v515
        %v704 = vunpack.c.l.b16 %v516
        %v705 = vunpack.c.h.b16 %v516
        %v706 = vunpack.c.l.b16 %v517
        %v707 = vunpack.c.h.b16 %v517
        %v708 = vunpack.c.l.b16 %v518
        %v709 = vunpack.c.h.b16 %v518
        %v710 = vunpack.c.l.b16 %v519
        %v711 = vunpack.c.h.b16 %v519
        %v712 = vunpack.c.l.b16 %v520
        %v713 = vunpack.c.h.b16 %v520
        %v714 = vunpack.c.l.b16 %v521
        %v715 = vunpack.c.h.b16 %v521
        %v716 = vunpack.c.l.b16 %v522
        %v717 = vunpack.c.h.b16 %v522
        %v718 = vunpack.c.l.b16 %v523
        %v719 = vunpack.c.h.b16 %v523
        %v720 = vunpack.c.l.b16 %v524
        %v721 = vunpack.c.h.b16 %v524
        %v722 = vunpack.c.l.b16 %v525
        %v723 = vunpack.c.h.b16 %v525
        %v724 = vunpack.c.l.b16 %v526
        %v725 = vunpack.c.h.b16 %v526
        %v726 = vunpack.c.l.b16 %v527
        %v727 = vunpack.c.h.b16 %v527
        %v728 = vunpack.c.l.b16 %v528
        %v729 = vunpack.c.h.b16 %v528
        %v730 = vunpack.c.l.b16 %v529
        %v731 = vunpack.c.h.b16 %v529
        %v732 = vunpack.c.l.b16 %v530
        %v733 = vunpack.c.h.b16 %v530
        %v734 = vunpack.c.l.b16 %v531
        %v735 = vunpack.c.h.b16 %v531
        %v736 = vpack.c.b16 %v610, %v608
        %v737 = vpack.c.b16 %v611, %v609
        %v738 = vpack.c.b16 %v614, %v612
        %v739 = vpack.c.b16 %v615, %v613
        %v740 = vpack.c.b16 %v618, %v616
        %v741 = vpack.c.b16 %v619, %v617
        %v742 = vpack.c.b16 %v622, %v620
        %v743 = vpack.c.b16 %v623, %v621
        %v744 = vpack.c.b16 %v626, %v624
        %v745 = vpack.c.b16 %v627, %v625
        %v746 = vpack.c.b16 %v630, %v628
        %v747 = vpack.c.b16 %v631, %v629
        %v748 = vpack.c.b16 %v634, %v632
        %v749 = vpack.c.b16 %v635, %v633
        %v750 = vpack.c.b16 %v638, %v636
        %v751 = vpack.c.b16 %v639, %v637
        %v752 = vpack.c.b16 %v642, %v640
        %v753 = vpack.c.b16 %v643, %v641
        %v754 = vpack.c.b16 %v646, %v644
        %v755 = vpack.c.b16 %v647, %v645
        %v756 = vpack.c.b16 %v650, %v648
        %v757 = vpack.c.b16 %v651, %v649
        %v758 = vpack.c.b16 %v654, %v652
        %v759 = vpack.c.b16 %v655, %v653
        %v760 = vpack.c.b16 %v658, %v656
        %v761 = vpack.c.b16 %v659, %v657
        %v762 = vpack.c.b16 %v662, %v660
        %v763 = vpack.c.b16 %v663, %v661
        %v764 = vpack.c.b16 %v666, %v664
        %v765 = vpack.c.b16 %v667, %v665
        %v766 = vpack.c.b16 %v670, %v668
        %v767 = vpack.c.b16 %v671, %v669
        %v768 = vpack.c.b16 %v674, %v672
        %v769 = vpack.c.b16 %v675, %v673
        %v770 = vpack.c.b16 %v678, %v676
        %v771 = vpack.c.b16 %v679, %v677
        %v772 = vpack.c.b16 %v682, %v680
        %v773 = vpack.c.b16 %v683, %v681
        %v774 = vpack.c.b16 %v686, %v684
        %v775 = vpack.c.b16 %v687, %v685
        %v776 = vpack.c.b16 %v690, %v688
        %v777 = vpack.c.b16 %v691, %v689
        %v778 = vpack.c.b16 %v694, %v692
        %v779 = vpack.c.b16 %v695, %v693
        %v780 = vpack.c.b16 %v698, %v696
        %v781 = vpack.c.b16 %v699, %v697
        %v782 = vpack.c.b16 %v702, %v700
        %v783 = vpack.c.b16 %v703, %v701
        %v784 = vpack.c.b16 %v706, %v704
        %v785 = vpack.c.b16 %v707, %v705
        %v786 = vpack.c.b16 %v710, %v708
        %v787 = vpack.c.b16 %v711, %v709
        %v788 = vpack.c.b16 %v714, %v712
        %v789 = vpack.c.b16 %v715, %v713
        %v790 = vpack.c.b16 %v718, %v716
        %v791 = vpack.c.b16 %v719, %v717
        %v792 = vpack.c.b16 %v722, %v720
        %v793 = vpack.c.b16 %v723, %v721
        %v794 = vpack.c.b16 %v726, %v724
        %v795 = vpack.c.b16 %v727, %v725
        %v796 = vpack.c.b16 %v730, %v728
        %v797 = vpack.c.b16 %v731, %v729
        %v798 = vpack.c.b16 %v734, %v732
        %v799 = vpack.c.b16 %v735, %v733
        %864 = vmatprep.subr.bf16.mxu0 %v737
        %865 = vmatpush1.bf16.msra.mxu0 %v736
        %866 = vmatprep.subr.bf16.mxu0 %v739
        %867 = vmatpush1.bf16.msra.mxu0 %v738
        %868 = vmatprep.subr.bf16.mxu0 %v741
        %869 = vmatpush1.bf16.msra.mxu0 %v740
        %870 = vmatprep.subr.bf16.mxu0 %v743
        %871 = vmatpush1.bf16.msra.mxu0 %v742
        %872 = vmatprep.subr.bf16.mxu0 %v745
        %873 = vmatpush1.bf16.msra.mxu0 %v744
        %874 = vmatprep.subr.bf16.mxu0 %v747
        %875 = vmatpush1.bf16.msra.mxu0 %v746
        %876 = vmatprep.subr.bf16.mxu0 %v749
        %877 = vmatpush1.bf16.msra.mxu0 %v748
        %878 = vmatprep.subr.bf16.mxu0 %v751
        %879 = vmatpush1.bf16.msra.mxu0 %v750
        %880 = vmatprep.subr.bf16.mxu0 %v753
        %881 = vmatpush1.bf16.msra.mxu0 %v752
        %882 = vmatprep.subr.bf16.mxu0 %v755
        %883 = vmatpush1.bf16.msra.mxu0 %v754
        %884 = vmatprep.subr.bf16.mxu0 %v757
        %885 = vmatpush1.bf16.msra.mxu0 %v756
        %886 = vmatprep.subr.bf16.mxu0 %v759
        %887 = vmatpush1.bf16.msra.mxu0 %v758
        %888 = vmatprep.subr.bf16.mxu0 %v761
        %889 = vmatpush1.bf16.msra.mxu0 %v760
        %890 = vmatprep.subr.bf16.mxu0 %v763
        %891 = vmatpush1.bf16.msra.mxu0 %v762
        %892 = vmatprep.subr.bf16.mxu0 %v765
        %893 = vmatpush1.bf16.msra.mxu0 %v764
        %894 = vmatprep.subr.bf16.mxu0 %v767
        %895 = vmatpush1.bf16.msra.mxu0 %v766
        %896 = vmatprep.mubr.bf16.mxu0 %v405
        %897 = vmatmul.mubr.bf16.gmra.mrb[0].mxu0 %v404
        %v898 = vpop.f32.mrb[0].mxu0
        %v899 = vadd.f32 %v537, %v898
        %v900 = vpop.f32.mrb[0].mxu0
        %v901 = vadd.f32 %v541, %v900
        %v902 = vpop.f32.mrb[0].mxu0
        %v903 = vadd.f32 %v537, %v902
        %v904 = vpop.f32.mrb[0].mxu0
        %v905 = vadd.f32 %v541, %v904
        %906 = vmatprep.mubr.bf16.mxu0 %v409
        %907 = vmatmul.mubr.bf16.gmra.mrb[0].mxu0 %v408
        %v908 = vpop.f32.mrb[0].mxu0
        %v909 = vadd.f32 %v537, %v908
        %v910 = vpop.f32.mrb[0].mxu0
        %v911 = vadd.f32 %v541, %v910
        %v912 = vpop.f32.mrb[0].mxu0
        %v913 = vadd.f32 %v537, %v912
        %v914 = vpop.f32.mrb[0].mxu0
        %v915 = vadd.f32 %v541, %v914
        %916 = vmatprep.mubr.bf16.mxu0 %v413
        %917 = vmatmul.mubr.bf16.gmra.mrb[0].mxu0 %v412
        %v918 = vpop.f32.mrb[0].mxu0
        %v919 = vadd.f32 %v537, %v918
        %v920 = vpop.f32.mrb[0].mxu0
        %v921 = vadd.f32 %v541, %v920
        %v922 = vpop.f32.mrb[0].mxu0
        %v923 = vadd.f32 %v537, %v922
        %v924 = vpop.f32.mrb[0].mxu0
        %v925 = vadd.f32 %v541, %v924
        %926 = vmatprep.mubr.bf16.mxu0 %v417
        %927 = vmatmul.mubr.bf16.gmra.mrb[0].mxu0 %v416
        %v928 = vpop.f32.mrb[0].mxu0
        %v929 = vadd.f32 %v537, %v928
        %v930 = vpop.f32.mrb[0].mxu0
        %v931 = vadd.f32 %v541, %v930
        %v932 = vpop.f32.mrb[0].mxu0
        %v933 = vadd.f32 %v537, %v932
        %v934 = vpop.f32.mrb[0].mxu0
        %v935 = vadd.f32 %v541, %v934
        %936 = vmatprep.mubr.bf16.mxu0 %v421
        %937 = vmatmul.mubr.bf16.gmra.mrb[0].mxu0 %v420
        %v938 = vpop.f32.mrb[0].mxu0
        %v939 = vadd.f32 %v537, %v938
        %v940 = vpop.f32.mrb[0].mxu0
        %v941 = vadd.f32 %v541, %v940
        %v942 = vpop.f32.mrb[0].mxu0
        %v943 = vadd.f32 %v537, %v942
        %v944 = vpop.f32.mrb[0].mxu0
        %v945 = vadd.f32 %v541, %v944
        %946 = vmatprep.mubr.bf16.mxu0 %v425
        %947 = vmatmul.mubr.bf16.gmra.mrb[0].mxu0 %v424
        %v948 = vpop.f32.mrb[0].mxu0
        %v949 = vadd.f32 %v537, %v948
        %v950 = vpop.f32.mrb[0].mxu0
        %v951 = vadd.f32 %v541, %v950
        %v952 = vpop.f32.mrb[0].mxu0
        %v953 = vadd.f32 %v537, %v952
        %v954 = vpop.f32.mrb[0].mxu0
        %v955 = vadd.f32 %v541, %v954
        %956 = vmatprep.mubr.bf16.mxu0 %v429
        %957 = vmatmul.mubr.bf16.gmra.mrb[0].mxu0 %v428
        %v958 = vpop.f32.mrb[0].mxu0
        %v959 = vadd.f32 %v537, %v958
        %v960 = vpop.f32.mrb[0].mxu0
        %v961 = vadd.f32 %v541, %v960
        %v962 = vpop.f32.mrb[0].mxu0
        %v963 = vadd.f32 %v537, %v962
        %v964 = vpop.f32.mrb[0].mxu0
        %v965 = vadd.f32 %v541, %v964
        %966 = vmatprep.mubr.bf16.mxu0 %v433
        %967 = vmatmul.mubr.bf16.gmra.mrb[0].mxu0 %v432
        %v968 = vpop.f32.mrb[0].mxu0
        %v969 = vadd.f32 %v537, %v968
        %v970 = vpop.f32.mrb[0].mxu0
        %v971 = vadd.f32 %v541, %v970
        %v972 = vpop.f32.mrb[0].mxu0
        %v973 = vadd.f32 %v537, %v972
        %v974 = vpop.f32.mrb[0].mxu0
        %v975 = vadd.f32 %v541, %v974
        %976 = vmatprep.mubr.bf16.mxu0 %v437
        %977 = vmatmul.mubr.bf16.gmra.mrb[0].mxu0 %v436
        %v978 = vpop.f32.mrb[0].mxu0
        %v979 = vadd.f32 %v537, %v978
        %v980 = vpop.f32.mrb[0].mxu0
        %v981 = vadd.f32 %v541, %v980
        %v982 = vpop.f32.mrb[0].mxu0
        %v983 = vadd.f32 %v537, %v982
        %v984 = vpop.f32.mrb[0].mxu0
        %v985 = vadd.f32 %v541, %v984
        %986 = vmatprep.mubr.bf16.mxu0 %v441
        %987 = vmatmul.mubr.bf16.gmra.mrb[0].mxu0 %v440
        %v988 = vpop.f32.mrb[0].mxu0
        %v989 = vadd.f32 %v537, %v988
        %v990 = vpop.f32.mrb[0].mxu0
        %v991 = vadd.f32 %v541, %v990
        %v992 = vpop.f32.mrb[0].mxu0
        %v993 = vadd.f32 %v537, %v992
        %v994 = vpop.f32.mrb[0].mxu0
        %v995 = vadd.f32 %v541, %v994
        %996 = vmatprep.mubr.bf16.mxu0 %v445
        %997 = vmatmul.mubr.bf16.gmra.mrb[0].mxu0 %v444
        %v998 = vpop.f32.mrb[0].mxu0
        %v999 = vadd.f32 %v537, %v998
        %v1000 = vpop.f32.mrb[0].mxu0
        %v1001 = vadd.f32 %v541, %v1000
        %v1002 = vpop.f32.mrb[0].mxu0
        %v1003 = vadd.f32 %v537, %v1002
        %v1004 = vpop.f32.mrb[0].mxu0
        %v1005 = vadd.f32 %v541, %v1004
        %1006 = vmatprep.mubr.bf16.mxu0 %v449
        %1007 = vmatmul.mubr.bf16.gmra.mrb[0].mxu0 %v448
        %v1008 = vpop.f32.mrb[0].mxu0
        %v1009 = vadd.f32 %v537, %v1008
        %v1010 = vpop.f32.mrb[0].mxu0
        %v1011 = vadd.f32 %v541, %v1010
        %v1012 = vpop.f32.mrb[0].mxu0
        %v1013 = vadd.f32 %v537, %v1012
        %v1014 = vpop.f32.mrb[0].mxu0
        %v1015 = vadd.f32 %v541, %v1014
        %1016 = vmatprep.mubr.bf16.mxu0 %v453
        %1017 = vmatmul.mubr.bf16.gmra.mrb[0].mxu0 %v452
        %v1018 = vpop.f32.mrb[0].mxu0
        %v1019 = vadd.f32 %v537, %v1018
        %v1020 = vpop.f32.mrb[0].mxu0
        %v1021 = vadd.f32 %v541, %v1020
        %v1022 = vpop.f32.mrb[0].mxu0
        %v1023 = vadd.f32 %v537, %v1022
        %v1024 = vpop.f32.mrb[0].mxu0
        %v1025 = vadd.f32 %v541, %v1024
        %1026 = vmatprep.mubr.bf16.mxu0 %v457
        %1027 = vmatmul.mubr.bf16.gmra.mrb[0].mxu0 %v456
        %v1028 = vpop.f32.mrb[0].mxu0
        %v1029 = vadd.f32 %v537, %v1028
        %v1030 = vpop.f32.mrb[0].mxu0
        %v1031 = vadd.f32 %v541, %v1030
        %v1032 = vpop.f32.mrb[0].mxu0
        %v1033 = vadd.f32 %v537, %v1032
        %v1034 = vpop.f32.mrb[0].mxu0
        %v1035 = vadd.f32 %v541, %v1034
        %1036 = vmatprep.mubr.bf16.mxu0 %v461
        %1037 = vmatmul.mubr.bf16.gmra.mrb[0].mxu0 %v460
        %v1038 = vpop.f32.mrb[0].mxu0
        %v1039 = vadd.f32 %v537, %v1038
        %v1040 = vpop.f32.mrb[0].mxu0
        %v1041 = vadd.f32 %v541, %v1040
        %v1042 = vpop.f32.mrb[0].mxu0
        %v1043 = vadd.f32 %v537, %v1042
        %v1044 = vpop.f32.mrb[0].mxu0
        %v1045 = vadd.f32 %v541, %v1044
        %1046 = vmatprep.mubr.bf16.mxu0 %v465
        %1047 = vmatmul.mubr.bf16.gmra.mrb[0].mxu0 %v464
        %v1048 = vpop.f32.mrb[0].mxu0
        %v1049 = vadd.f32 %v537, %v1048
        %v1050 = vpop.f32.mrb[0].mxu0
        %v1051 = vadd.f32 %v541, %v1050
        %v1052 = vpop.f32.mrb[0].mxu0
        %v1053 = vadd.f32 %v537, %v1052
        %v1054 = vpop.f32.mrb[0].mxu0
        %v1055 = vadd.f32 %v541, %v1054
        %1056 = vdwg.mxu0
        %1057 = vmatprep.subr.bf16.mxu0 %v769
        %1058 = vmatpush1.bf16.msra.mxu0 %v768
        %1059 = vmatprep.subr.bf16.mxu0 %v771
        %1060 = vmatpush1.bf16.msra.mxu0 %v770
        %1061 = vmatprep.subr.bf16.mxu0 %v773
        %1062 = vmatpush1.bf16.msra.mxu0 %v772
        %1063 = vmatprep.subr.bf16.mxu0 %v775
        %1064 = vmatpush1.bf16.msra.mxu0 %v774
        %1065 = vmatprep.subr.bf16.mxu0 %v777
        %1066 = vmatpush1.bf16.msra.mxu0 %v776
        %1067 = vmatprep.subr.bf16.mxu0 %v779
        %1068 = vmatpush1.bf16.msra.mxu0 %v778
        %1069 = vmatprep.subr.bf16.mxu0 %v781
        %1070 = vmatpush1.bf16.msra.mxu0 %v780
        %1071 = vmatprep.subr.bf16.mxu0 %v783
        %1072 = vmatpush1.bf16.msra.mxu0 %v782
        %1073 = vmatprep.subr.bf16.mxu0 %v785
        %1074 = vmatpush1.bf16.msra.mxu0 %v784
        %1075 = vmatprep.subr.bf16.mxu0 %v787
        %1076 = vmatpush1.bf16.msra.mxu0 %v786
        %1077 = vmatprep.subr.bf16.mxu0 %v789
        %1078 = vmatpush1.bf16.msra.mxu0 %v788
        %1079 = vmatprep.subr.bf16.mxu0 %v791
        %1080 = vmatpush1.bf16.msra.mxu0 %v790
        %1081 = vmatprep.subr.bf16.mxu0 %v793
        %1082 = vmatpush1.bf16.msra.mxu0 %v792
        %1083 = vmatprep.subr.bf16.mxu0 %v795
        %1084 = vmatpush1.bf16.msra.mxu0 %v794
        %1085 = vmatprep.subr.bf16.mxu0 %v797
        %1086 = vmatpush1.bf16.msra.mxu0 %v796
        %1087 = vmatprep.subr.bf16.mxu0 %v799
        %1088 = vmatpush1.bf16.msra.mxu0 %v798
        %1089 = vmatprep.mubr.bf16.mxu0 %v407
        %1090 = vmatmul.mubr.bf16.gmra.mrb[0].mxu0 %v406
        %v1091 = vpop.f32.mrb[0].mxu0
        %v1092 = vadd.f32 %v899, %v1091
        %v1093 = vpop.f32.mrb[0].mxu0
        %v1094 = vadd.f32 %v901, %v1093
        %v1095 = vpop.f32.mrb[0].mxu0
        %v1096 = vadd.f32 %v903, %v1095
        %v1097 = vpop.f32.mrb[0].mxu0
        %v1098 = vadd.f32 %v905, %v1097
        %1099 = vmatprep.mubr.bf16.mxu0 %v411
        %1100 = vmatmul.mubr.bf16.gmra.mrb[0].mxu0 %v410
        %v1101 = vpop.f32.mrb[0].mxu0
        %v1102 = vadd.f32 %v909, %v1101
        %v1103 = vpop.f32.mrb[0].mxu0
        %v1104 = vadd.f32 %v911, %v1103
        %v1105 = vpop.f32.mrb[0].mxu0
        %v1106 = vadd.f32 %v913, %v1105
        %v1107 = vpop.f32.mrb[0].mxu0
        %v1108 = vadd.f32 %v915, %v1107
        %1109 = vmatprep.mubr.bf16.mxu0 %v415
        %1110 = vmatmul.mubr.bf16.gmra.mrb[0].mxu0 %v414
        %v1111 = vpop.f32.mrb[0].mxu0
        %v1112 = vadd.f32 %v919, %v1111
        %v1113 = vpop.f32.mrb[0].mxu0
        %v1114 = vadd.f32 %v921, %v1113
        %v1115 = vpop.f32.mrb[0].mxu0
        %v1116 = vadd.f32 %v923, %v1115
        %v1117 = vpop.f32.mrb[0].mxu0
        %v1118 = vadd.f32 %v925, %v1117
        %1119 = vmatprep.mubr.bf16.mxu0 %v419
        %1120 = vmatmul.mubr.bf16.gmra.mrb[0].mxu0 %v418
        %v1121 = vpop.f32.mrb[0].mxu0
        %v1122 = vadd.f32 %v929, %v1121
        %v1123 = vpop.f32.mrb[0].mxu0
        %v1124 = vadd.f32 %v931, %v1123
        %v1125 = vpop.f32.mrb[0].mxu0
        %v1126 = vadd.f32 %v933, %v1125
        %v1127 = vpop.f32.mrb[0].mxu0
        %v1128 = vadd.f32 %v935, %v1127
        %1129 = vmatprep.mubr.bf16.mxu0 %v423
        %1130 = vmatmul.mubr.bf16.gmra.mrb[0].mxu0 %v422
        %v1131 = vpop.f32.mrb[0].mxu0
        %v1132 = vadd.f32 %v939, %v1131
        %v1133 = vpop.f32.mrb[0].mxu0
        %v1134 = vadd.f32 %v941, %v1133
        %v1135 = vpop.f32.mrb[0].mxu0
        %v1136 = vadd.f32 %v943, %v1135
        %v1137 = vpop.f32.mrb[0].mxu0
        %v1138 = vadd.f32 %v945, %v1137
        %1139 = vmatprep.mubr.bf16.mxu0 %v427
        %1140 = vmatmul.mubr.bf16.gmra.mrb[0].mxu0 %v426
        %v1141 = vpop.f32.mrb[0].mxu0
        %v1142 = vadd.f32 %v949, %v1141
        %v1143 = vpop.f32.mrb[0].mxu0
        %v1144 = vadd.f32 %v951, %v1143
        %v1145 = vpop.f32.mrb[0].mxu0
        %v1146 = vadd.f32 %v953, %v1145
        %v1147 = vpop.f32.mrb[0].mxu0
        %v1148 = vadd.f32 %v955, %v1147
        %1149 = vmatprep.mubr.bf16.mxu0 %v431
        %1150 = vmatmul.mubr.bf16.gmra.mrb[0].mxu0 %v430
        %v1151 = vpop.f32.mrb[0].mxu0
        %v1152 = vadd.f32 %v959, %v1151
        %v1153 = vpop.f32.mrb[0].mxu0
        %v1154 = vadd.f32 %v961, %v1153
        %v1155 = vpop.f32.mrb[0].mxu0
        %v1156 = vadd.f32 %v963, %v1155
        %v1157 = vpop.f32.mrb[0].mxu0
        %v1158 = vadd.f32 %v965, %v1157
        %1159 = vmatprep.mubr.bf16.mxu0 %v435
        %1160 = vmatmul.mubr.bf16.gmra.mrb[0].mxu0 %v434
        %v1161 = vpop.f32.mrb[0].mxu0
        %v1162 = vadd.f32 %v969, %v1161
        %v1163 = vpop.f32.mrb[0].mxu0
        %v1164 = vadd.f32 %v971, %v1163
        %v1165 = vpop.f32.mrb[0].mxu0
        %v1166 = vadd.f32 %v973, %v1165
        %v1167 = vpop.f32.mrb[0].mxu0
        %v1168 = vadd.f32 %v975, %v1167
        %1169 = vmatprep.mubr.bf16.mxu0 %v439
        %1170 = vmatmul.mubr.bf16.gmra.mrb[0].mxu0 %v438
        %v1171 = vpop.f32.mrb[0].mxu0
        %v1172 = vadd.f32 %v979, %v1171
        %v1173 = vpop.f32.mrb[0].mxu0
        %v1174 = vadd.f32 %v981, %v1173
        %v1175 = vpop.f32.mrb[0].mxu0
        %v1176 = vadd.f32 %v983, %v1175
        %v1177 = vpop.f32.mrb[0].mxu0
        %v1178 = vadd.f32 %v985, %v1177
        %1179 = vmatprep.mubr.bf16.mxu0 %v443
        %1180 = vmatmul.mubr.bf16.gmra.mrb[0].mxu0 %v442
        %v1181 = vpop.f32.mrb[0].mxu0
        %v1182 = vadd.f32 %v989, %v1181
        %v1183 = vpop.f32.mrb[0].mxu0
        %v1184 = vadd.f32 %v991, %v1183
        %v1185 = vpop.f32.mrb[0].mxu0
        %v1186 = vadd.f32 %v993, %v1185
        %v1187 = vpop.f32.mrb[0].mxu0
        %v1188 = vadd.f32 %v995, %v1187
        %1189 = vmatprep.mubr.bf16.mxu0 %v447
        %1190 = vmatmul.mubr.bf16.gmra.mrb[0].mxu0 %v446
        %v1191 = vpop.f32.mrb[0].mxu0
        %v1192 = vadd.f32 %v999, %v1191
        %v1193 = vpop.f32.mrb[0].mxu0
        %v1194 = vadd.f32 %v1001, %v1193
        %v1195 = vpop.f32.mrb[0].mxu0
        %v1196 = vadd.f32 %v1003, %v1195
        %v1197 = vpop.f32.mrb[0].mxu0
        %v1198 = vadd.f32 %v1005, %v1197
        %1199 = vmatprep.mubr.bf16.mxu0 %v451
        %1200 = vmatmul.mubr.bf16.gmra.mrb[0].mxu0 %v450
        %v1201 = vpop.f32.mrb[0].mxu0
        %v1202 = vadd.f32 %v1009, %v1201
        %v1203 = vpop.f32.mrb[0].mxu0
        %v1204 = vadd.f32 %v1011, %v1203
        %v1205 = vpop.f32.mrb[0].mxu0
        %v1206 = vadd.f32 %v1013, %v1205
        %v1207 = vpop.f32.mrb[0].mxu0
        %v1208 = vadd.f32 %v1015, %v1207
        %1209 = vmatprep.mubr.bf16.mxu0 %v455
        %1210 = vmatmul.mubr.bf16.gmra.mrb[0].mxu0 %v454
        %v1211 = vpop.f32.mrb[0].mxu0
        %v1212 = vadd.f32 %v1019, %v1211
        %v1213 = vpop.f32.mrb[0].mxu0
        %v1214 = vadd.f32 %v1021, %v1213
        %v1215 = vpop.f32.mrb[0].mxu0
        %v1216 = vadd.f32 %v1023, %v1215
        %v1217 = vpop.f32.mrb[0].mxu0
        %v1218 = vadd.f32 %v1025, %v1217
        %1219 = vmatprep.mubr.bf16.mxu0 %v459
        %1220 = vmatmul.mubr.bf16.gmra.mrb[0].mxu0 %v458
        %v1221 = vpop.f32.mrb[0].mxu0
        %v1222 = vadd.f32 %v1029, %v1221
        %v1223 = vpop.f32.mrb[0].mxu0
        %v1224 = vadd.f32 %v1031, %v1223
        %v1225 = vpop.f32.mrb[0].mxu0
        %v1226 = vadd.f32 %v1033, %v1225
        %v1227 = vpop.f32.mrb[0].mxu0
        %v1228 = vadd.f32 %v1035, %v1227
        %1229 = vmatprep.mubr.bf16.mxu0 %v463
        %1230 = vmatmul.mubr.bf16.gmra.mrb[0].mxu0 %v462
        %v1231 = vpop.f32.mrb[0].mxu0
        %v1232 = vadd.f32 %v1039, %v1231
        %v1233 = vpop.f32.mrb[0].mxu0
        %v1234 = vadd.f32 %v1041, %v1233
        %v1235 = vpop.f32.mrb[0].mxu0
        %v1236 = vadd.f32 %v1043, %v1235
        %v1237 = vpop.f32.mrb[0].mxu0
        %v1238 = vadd.f32 %v1045, %v1237
        %1239 = vmatprep.mubr.bf16.mxu0 %v467
        %1240 = vmatmul.mubr.bf16.gmra.mrb[0].mxu0 %v466
        %v1241 = vpop.f32.mrb[0].mxu0
        %v1242 = vadd.f32 %v1049, %v1241
        %v1243 = vpop.f32.mrb[0].mxu0
        %v1244 = vadd.f32 %v1051, %v1243
        %v1245 = vpop.f32.mrb[0].mxu0
        %v1246 = vadd.f32 %v1053, %v1245
        %v1247 = vpop.f32.mrb[0].mxu0
        %v1248 = vadd.f32 %v1055, %v1247
        %1249 = vdwg.mxu0
        %v1250 = vmax.f32 %v1092, 0.0
        %v1251 = vmax.f32 %v1094, 0.0
        %v1252 = vmax.f32 %v1096, 0.0
        %v1253 = vmax.f32 %v1098, 0.0
        %v1254 = vmax.f32 %v1102, 0.0
        %v1255 = vmax.f32 %v1104, 0.0
        %v1256 = vmax.f32 %v1106, 0.0
        %v1257 = vmax.f32 %v1108, 0.0
        %v1258 = vmax.f32 %v1112, 0.0
        %v1259 = vmax.f32 %v1114, 0.0
        %v1260 = vmax.f32 %v1116, 0.0
        %v1261 = vmax.f32 %v1118, 0.0
        %v1262 = vmax.f32 %v1122, 0.0
        %v1263 = vmax.f32 %v1124, 0.0
        %v1264 = vmax.f32 %v1126, 0.0
        %v1265 = vmax.f32 %v1128, 0.0
        %v1266 = vmax.f32 %v1132, 0.0
        %v1267 = vmax.f32 %v1134, 0.0
        %v1268 = vmax.f32 %v1136, 0.0
        %v1269 = vmax.f32 %v1138, 0.0
        %v1270 = vmax.f32 %v1142, 0.0
        %v1271 = vmax.f32 %v1144, 0.0
        %v1272 = vmax.f32 %v1146, 0.0
        %v1273 = vmax.f32 %v1148, 0.0
        %v1274 = vmax.f32 %v1152, 0.0
        %v1275 = vmax.f32 %v1154, 0.0
        %v1276 = vmax.f32 %v1156, 0.0
        %v1277 = vmax.f32 %v1158, 0.0
        %v1278 = vmax.f32 %v1162, 0.0
        %v1279 = vmax.f32 %v1164, 0.0
        %v1280 = vmax.f32 %v1166, 0.0
        %v1281 = vmax.f32 %v1168, 0.0
        %v1282 = vmax.f32 %v1172, 0.0
        %v1283 = vmax.f32 %v1174, 0.0
        %v1284 = vmax.f32 %v1176, 0.0
        %v1285 = vmax.f32 %v1178, 0.0
        %v1286 = vmax.f32 %v1182, 0.0
        %v1287 = vmax.f32 %v1184, 0.0
        %v1288 = vmax.f32 %v1186, 0.0
        %v1289 = vmax.f32 %v1188, 0.0
        %v1290 = vmax.f32 %v1192, 0.0
        %v1291 = vmax.f32 %v1194, 0.0
        %v1292 = vmax.f32 %v1196, 0.0
        %v1293 = vmax.f32 %v1198, 0.0
        %v1294 = vmax.f32 %v1202, 0.0
        %v1295 = vmax.f32 %v1204, 0.0
        %v1296 = vmax.f32 %v1206, 0.0
        %v1297 = vmax.f32 %v1208, 0.0
        %v1298 = vmax.f32 %v1212, 0.0
        %v1299 = vmax.f32 %v1214, 0.0
        %v1300 = vmax.f32 %v1216, 0.0
        %v1301 = vmax.f32 %v1218, 0.0
        %v1302 = vmax.f32 %v1222, 0.0
        %v1303 = vmax.f32 %v1224, 0.0
        %v1304 = vmax.f32 %v1226, 0.0
        %v1305 = vmax.f32 %v1228, 0.0
        %v1306 = vmax.f32 %v1232, 0.0
        %v1307 = vmax.f32 %v1234, 0.0
        %v1308 = vmax.f32 %v1236, 0.0
        %v1309 = vmax.f32 %v1238, 0.0
        %v1310 = vmax.f32 %v1242, 0.0
        %v1311 = vmax.f32 %v1244, 0.0
        %v1312 = vmax.f32 %v1246, 0.0
        %v1313 = vmax.f32 %v1248, 0.0
        %v1314 = vpack.c.bf16 %v1252, %v1250
        %v1315 = vpack.c.bf16 %v1253, %v1251
        %v1316 = vpack.c.bf16 %v1256, %v1254
        %v1317 = vpack.c.bf16 %v1257, %v1255
        %v1318 = vpack.c.bf16 %v1260, %v1258
        %v1319 = vpack.c.bf16 %v1261, %v1259
        %v1320 = vpack.c.bf16 %v1264, %v1262
        %v1321 = vpack.c.bf16 %v1265, %v1263
        %v1322 = vpack.c.bf16 %v1268, %v1266
        %v1323 = vpack.c.bf16 %v1269, %v1267
        %v1324 = vpack.c.bf16 %v1272, %v1270
        %v1325 = vpack.c.bf16 %v1273, %v1271
        %v1326 = vpack.c.bf16 %v1276, %v1274
        %v1327 = vpack.c.bf16 %v1277, %v1275
        %v1328 = vpack.c.bf16 %v1280, %v1278
        %v1329 = vpack.c.bf16 %v1281, %v1279
        %v1330 = vpack.c.bf16 %v1284, %v1282
        %v1331 = vpack.c.bf16 %v1285, %v1283
        %v1332 = vpack.c.bf16 %v1288, %v1286
        %v1333 = vpack.c.bf16 %v1289, %v1287
        %v1334 = vpack.c.bf16 %v1292, %v1290
        %v1335 = vpack.c.bf16 %v1293, %v1291
        %v1336 = vpack.c.bf16 %v1296, %v1294
        %v1337 = vpack.c.bf16 %v1297, %v1295
        %v1338 = vpack.c.bf16 %v1300, %v1298
        %v1339 = vpack.c.bf16 %v1301, %v1299
        %v1340 = vpack.c.bf16 %v1304, %v1302
        %v1341 = vpack.c.bf16 %v1305, %v1303
        %v1342 = vpack.c.bf16 %v1308, %v1306
        %v1343 = vpack.c.bf16 %v1309, %v1307
        %v1344 = vpack.c.bf16 %v1312, %v1310
        %v1345 = vpack.c.bf16 %v1313, %v1311
        %v1346 = vld [vmem:[#allocation7] sm:$0xf]
        %v1347 = vld [vmem:[#allocation7 + $0x4] sm:$0xf]
        %v1348 = vld [vmem:[#allocation7 + $0x8] sm:$0xf]
        %v1349 = vld [vmem:[#allocation7 + $0xc] sm:$0xf]
        %v1350 = vld [vmem:[#allocation7 + $0x10] sm:$0xf]
        %v1351 = vld [vmem:[#allocation7 + $0x14] sm:$0xf]
        %v1352 = vld [vmem:[#allocation7 + $0x18] sm:$0xf]
        %v1353 = vld [vmem:[#allocation7 + $0x1c] sm:$0xf]
        %v1354 = vld [vmem:[#allocation7 + $0x20] sm:$0xf]
        %v1355 = vld [vmem:[#allocation7 + $0x24] sm:$0xf]
        %v1356 = vld [vmem:[#allocation7 + $0x28] sm:$0xf]
        %v1357 = vld [vmem:[#allocation7 + $0x2c] sm:$0xf]
        %v1358 = vld [vmem:[#allocation7 + $0x30] sm:$0xf]
        %v1359 = vld [vmem:[#allocation7 + $0x34] sm:$0xf]
        %v1360 = vld [vmem:[#allocation7 + $0x38] sm:$0xf]
        %v1361 = vld [vmem:[#allocation7 + $0x3c] sm:$0xf]
        %v1362 = vld [vmem:[#allocation7 + $0x40] sm:$0xf]
        %v1363 = vld [vmem:[#allocation7 + $0x44] sm:$0xf]
        %v1364 = vld [vmem:[#allocation7 + $0x48] sm:$0xf]
        %v1365 = vld [vmem:[#allocation7 + $0x4c] sm:$0xf]
        %v1366 = vld [vmem:[#allocation7 + $0x50] sm:$0xf]
        %v1367 = vld [vmem:[#allocation7 + $0x54] sm:$0xf]
        %v1368 = vld [vmem:[#allocation7 + $0x58] sm:$0xf]
        %v1369 = vld [vmem:[#allocation7 + $0x5c] sm:$0xf]
        %v1370 = vld [vmem:[#allocation7 + $0x60] sm:$0xf]
        %v1371 = vld [vmem:[#allocation7 + $0x64] sm:$0xf]
        %v1372 = vld [vmem:[#allocation7 + $0x68] sm:$0xf]
        %v1373 = vld [vmem:[#allocation7 + $0x6c] sm:$0xf]
        %v1374 = vld [vmem:[#allocation7 + $0x70] sm:$0xf]
        %v1375 = vld [vmem:[#allocation7 + $0x74] sm:$0xf]
        %v1376 = vld [vmem:[#allocation7 + $0x78] sm:$0xf]
        %v1377 = vld [vmem:[#allocation7 + $0x7c] sm:$0xf]
        %v1378 = vld [vmem:[%s4] sm:$0x1]
        %v1380 = vlaneseq
        %v1381 = vshrl.u32 %v1380, 7
        %v1382 = vsub.s32 0, %v1381
        %v1383 = vrot.slane %v1378, %v1382
        %v1417 = vunpack.c.l.b16 %v1346
        %v1418 = vunpack.c.l.b16 %v1347
        %v1419 = vunpack.c.l.b16 %v1348
        %v1420 = vunpack.c.l.b16 %v1349
        %v1421 = vunpack.c.l.b16 %v1350
        %v1422 = vunpack.c.l.b16 %v1351
        %v1423 = vunpack.c.l.b16 %v1352
        %v1424 = vunpack.c.l.b16 %v1353
        %v1425 = vunpack.c.l.b16 %v1354
        %v1426 = vunpack.c.l.b16 %v1355
        %v1427 = vunpack.c.l.b16 %v1356
        %v1428 = vunpack.c.l.b16 %v1357
        %v1429 = vunpack.c.l.b16 %v1358
        %v1430 = vunpack.c.l.b16 %v1359
        %v1431 = vunpack.c.l.b16 %v1360
        %v1432 = vunpack.c.l.b16 %v1361
        %v1433 = vunpack.c.l.b16 %v1362
        %v1434 = vunpack.c.l.b16 %v1363
        %v1435 = vunpack.c.l.b16 %v1364
        %v1436 = vunpack.c.l.b16 %v1365
        %v1437 = vunpack.c.l.b16 %v1366
        %v1438 = vunpack.c.l.b16 %v1367
        %v1439 = vunpack.c.l.b16 %v1368
        %v1440 = vunpack.c.l.b16 %v1369
        %v1441 = vunpack.c.l.b16 %v1370
        %v1442 = vunpack.c.l.b16 %v1371
        %v1443 = vunpack.c.l.b16 %v1372
        %v1444 = vunpack.c.l.b16 %v1373
        %v1445 = vunpack.c.l.b16 %v1374
        %v1446 = vunpack.c.l.b16 %v1375
        %v1447 = vunpack.c.l.b16 %v1376
        %v1448 = vunpack.c.l.b16 %v1377
        %v1449 = vpack.c.b16 %v1418, %v1417
        %v1450 = vpack.c.b16 %v1420, %v1419
        %v1451 = vpack.c.b16 %v1422, %v1421
        %v1452 = vpack.c.b16 %v1424, %v1423
        %v1453 = vpack.c.b16 %v1426, %v1425
        %v1454 = vpack.c.b16 %v1428, %v1427
        %v1455 = vpack.c.b16 %v1430, %v1429
        %v1456 = vpack.c.b16 %v1432, %v1431
        %v1457 = vpack.c.b16 %v1434, %v1433
        %v1458 = vpack.c.b16 %v1436, %v1435
        %v1459 = vpack.c.b16 %v1438, %v1437
        %v1460 = vpack.c.b16 %v1440, %v1439
        %v1461 = vpack.c.b16 %v1442, %v1441
        %v1462 = vpack.c.b16 %v1444, %v1443
        %v1463 = vpack.c.b16 %v1446, %v1445
        %v1464 = vpack.c.b16 %v1448, %v1447
        %1481 = vmatprep.subr.bf16.mxu0 0
        %1482 = vmatpush1.bf16.msra.mxu0 %v1449
        %1483 = vmatprep.subr.bf16.mxu0 0
        %1484 = vmatpush1.bf16.msra.mxu0 %v1450
        %1485 = vmatprep.subr.bf16.mxu0 0
        %1486 = vmatpush1.bf16.msra.mxu0 %v1451
        %1487 = vmatprep.subr.bf16.mxu0 0
        %1488 = vmatpush1.bf16.msra.mxu0 %v1452
        %1489 = vmatprep.subr.bf16.mxu0 0
        %1490 = vmatpush1.bf16.msra.mxu0 %v1453
        %1491 = vmatprep.subr.bf16.mxu0 0
        %1492 = vmatpush1.bf16.msra.mxu0 %v1454
        %1493 = vmatprep.subr.bf16.mxu0 0
        %1494 = vmatpush1.bf16.msra.mxu0 %v1455
        %1495 = vmatprep.subr.bf16.mxu0 0
        %1496 = vmatpush1.bf16.msra.mxu0 %v1456
        %1497 = vmatprep.subr.bf16.mxu0 0
        %1498 = vmatpush1.bf16.msra.mxu0 %v1457
        %1499 = vmatprep.subr.bf16.mxu0 0
        %1500 = vmatpush1.bf16.msra.mxu0 %v1458
        %1501 = vmatprep.subr.bf16.mxu0 0
        %1502 = vmatpush1.bf16.msra.mxu0 %v1459
        %1503 = vmatprep.subr.bf16.mxu0 0
        %1504 = vmatpush1.bf16.msra.mxu0 %v1460
        %1505 = vmatprep.subr.bf16.mxu0 0
        %1506 = vmatpush1.bf16.msra.mxu0 %v1461
        %1507 = vmatprep.subr.bf16.mxu0 0
        %1508 = vmatpush1.bf16.msra.mxu0 %v1462
        %1509 = vmatprep.subr.bf16.mxu0 0
        %1510 = vmatpush1.bf16.msra.mxu0 %v1463
        %1511 = vmatprep.subr.bf16.mxu0 0
        %1512 = vmatpush1.bf16.msra.mxu0 %v1464
        %1513 = vmatprep.mubr.bf16.mxu0 %v1315
        %1514 = vmatmul.mubr.bf16.gmra.mrb[0].mxu0 %v1314
        %v1515 = vpop.f32.mrb[0].mxu0
        %v1516 = vadd.f32 %v1383, %v1515
        %v1517 = vpop.f32.mrb[0].mxu0
        %v1518 = vpop.f32.mrb[0].mxu0
        %v1519 = vadd.f32 %v1383, %v1518
        %v1520 = vpop.f32.mrb[0].mxu0
        %1521 = vmatprep.mubr.bf16.mxu0 %v1317
        %1522 = vmatmul.mubr.bf16.gmra.mrb[0].mxu0 %v1316
        %v1523 = vpop.f32.mrb[0].mxu0
        %v1524 = vadd.f32 %v1383, %v1523
        %v1525 = vpop.f32.mrb[0].mxu0
        %v1526 = vpop.f32.mrb[0].mxu0
        %v1527 = vadd.f32 %v1383, %v1526
        %v1528 = vpop.f32.mrb[0].mxu0
        %1529 = vmatprep.mubr.bf16.mxu0 %v1319
        %1530 = vmatmul.mubr.bf16.gmra.mrb[0].mxu0 %v1318
        %v1531 = vpop.f32.mrb[0].mxu0
        %v1532 = vadd.f32 %v1383, %v1531
        %v1533 = vpop.f32.mrb[0].mxu0
        %v1534 = vpop.f32.mrb[0].mxu0
        %v1535 = vadd.f32 %v1383, %v1534
        %v1536 = vpop.f32.mrb[0].mxu0
        %1537 = vmatprep.mubr.bf16.mxu0 %v1321
        %1538 = vmatmul.mubr.bf16.gmra.mrb[0].mxu0 %v1320
        %v1539 = vpop.f32.mrb[0].mxu0
        %v1540 = vadd.f32 %v1383, %v1539
        %v1541 = vpop.f32.mrb[0].mxu0
        %v1542 = vpop.f32.mrb[0].mxu0
        %v1543 = vadd.f32 %v1383, %v1542
        %v1544 = vpop.f32.mrb[0].mxu0
        %1545 = vmatprep.mubr.bf16.mxu0 %v1323
        %1546 = vmatmul.mubr.bf16.gmra.mrb[0].mxu0 %v1322
        %v1547 = vpop.f32.mrb[0].mxu0
        %v1548 = vadd.f32 %v1383, %v1547
        %v1549 = vpop.f32.mrb[0].mxu0
        %v1550 = vpop.f32.mrb[0].mxu0
        %v1551 = vadd.f32 %v1383, %v1550
        %v1552 = vpop.f32.mrb[0].mxu0
        %1553 = vmatprep.mubr.bf16.mxu0 %v1325
        %1554 = vmatmul.mubr.bf16.gmra.mrb[0].mxu0 %v1324
        %v1555 = vpop.f32.mrb[0].mxu0
        %v1556 = vadd.f32 %v1383, %v1555
        %v1557 = vpop.f32.mrb[0].mxu0
        %v1558 = vpop.f32.mrb[0].mxu0
        %v1559 = vadd.f32 %v1383, %v1558
        %v1560 = vpop.f32.mrb[0].mxu0
        %1561 = vmatprep.mubr.bf16.mxu0 %v1327
        %1562 = vmatmul.mubr.bf16.gmra.mrb[0].mxu0 %v1326
        %v1563 = vpop.f32.mrb[0].mxu0
        %v1564 = vadd.f32 %v1383, %v1563
        %v1565 = vpop.f32.mrb[0].mxu0
        %v1566 = vpop.f32.mrb[0].mxu0
        %v1567 = vadd.f32 %v1383, %v1566
        %v1568 = vpop.f32.mrb[0].mxu0
        %1569 = vmatprep.mubr.bf16.mxu0 %v1329
        %1570 = vmatmul.mubr.bf16.gmra.mrb[0].mxu0 %v1328
        %v1571 = vpop.f32.mrb[0].mxu0
        %v1572 = vadd.f32 %v1383, %v1571
        %v1573 = vpop.f32.mrb[0].mxu0
        %v1574 = vpop.f32.mrb[0].mxu0
        %v1575 = vadd.f32 %v1383, %v1574
        %v1576 = vpop.f32.mrb[0].mxu0
        %1577 = vmatprep.mubr.bf16.mxu0 %v1331
        %1578 = vmatmul.mubr.bf16.gmra.mrb[0].mxu0 %v1330
        %v1579 = vpop.f32.mrb[0].mxu0
        %v1580 = vadd.f32 %v1383, %v1579
        %v1581 = vpop.f32.mrb[0].mxu0
        %v1582 = vpop.f32.mrb[0].mxu0
        %v1583 = vadd.f32 %v1383, %v1582
        %v1584 = vpop.f32.mrb[0].mxu0
        %1585 = vmatprep.mubr.bf16.mxu0 %v1333
        %1586 = vmatmul.mubr.bf16.gmra.mrb[0].mxu0 %v1332
        %v1587 = vpop.f32.mrb[0].mxu0
        %v1588 = vadd.f32 %v1383, %v1587
        %v1589 = vpop.f32.mrb[0].mxu0
        %v1590 = vpop.f32.mrb[0].mxu0
        %v1591 = vadd.f32 %v1383, %v1590
        %v1592 = vpop.f32.mrb[0].mxu0
        %1593 = vmatprep.mubr.bf16.mxu0 %v1335
        %1594 = vmatmul.mubr.bf16.gmra.mrb[0].mxu0 %v1334
        %v1595 = vpop.f32.mrb[0].mxu0
        %v1596 = vadd.f32 %v1383, %v1595
        %v1597 = vpop.f32.mrb[0].mxu0
        %v1598 = vpop.f32.mrb[0].mxu0
        %v1599 = vadd.f32 %v1383, %v1598
        %v1600 = vpop.f32.mrb[0].mxu0
        %1601 = vmatprep.mubr.bf16.mxu0 %v1337
        %1602 = vmatmul.mubr.bf16.gmra.mrb[0].mxu0 %v1336
        %v1603 = vpop.f32.mrb[0].mxu0
        %v1604 = vadd.f32 %v1383, %v1603
        %v1605 = vpop.f32.mrb[0].mxu0
        %v1606 = vpop.f32.mrb[0].mxu0
        %v1607 = vadd.f32 %v1383, %v1606
        %v1608 = vpop.f32.mrb[0].mxu0
        %1609 = vmatprep.mubr.bf16.mxu0 %v1339
        %1610 = vmatmul.mubr.bf16.gmra.mrb[0].mxu0 %v1338
        %v1611 = vpop.f32.mrb[0].mxu0
        %v1612 = vadd.f32 %v1383, %v1611
        %v1613 = vpop.f32.mrb[0].mxu0
        %v1614 = vpop.f32.mrb[0].mxu0
        %v1615 = vadd.f32 %v1383, %v1614
        %v1616 = vpop.f32.mrb[0].mxu0
        %1617 = vmatprep.mubr.bf16.mxu0 %v1341
        %1618 = vmatmul.mubr.bf16.gmra.mrb[0].mxu0 %v1340
        %v1619 = vpop.f32.mrb[0].mxu0
        %v1620 = vadd.f32 %v1383, %v1619
        %v1621 = vpop.f32.mrb[0].mxu0
        %v1622 = vpop.f32.mrb[0].mxu0
        %v1623 = vadd.f32 %v1383, %v1622
        %v1624 = vpop.f32.mrb[0].mxu0
        %1625 = vmatprep.mubr.bf16.mxu0 %v1343
        %1626 = vmatmul.mubr.bf16.gmra.mrb[0].mxu0 %v1342
        %v1627 = vpop.f32.mrb[0].mxu0
        %v1628 = vadd.f32 %v1383, %v1627
        %v1629 = vpop.f32.mrb[0].mxu0
        %v1630 = vpop.f32.mrb[0].mxu0
        %v1631 = vadd.f32 %v1383, %v1630
        %v1632 = vpop.f32.mrb[0].mxu0
        %1633 = vmatprep.mubr.bf16.mxu0 %v1345
        %1634 = vmatmul.mubr.bf16.gmra.mrb[0].mxu0 %v1344
        %v1635 = vpop.f32.mrb[0].mxu0
        %v1636 = vadd.f32 %v1383, %v1635
        %v1637 = vpop.f32.mrb[0].mxu0
        %v1638 = vpop.f32.mrb[0].mxu0
        %v1639 = vadd.f32 %v1383, %v1638
        %v1640 = vpop.f32.mrb[0].mxu0
        %1641 = vdwg.mxu0
        %v1642 = vpack.c.bf16 %v1519, %v1516
        %v1643 = vpack.c.bf16 %v1527, %v1524
        %v1644 = vpack.c.bf16 %v1535, %v1532
        %v1645 = vpack.c.bf16 %v1543, %v1540
        %v1646 = vpack.c.bf16 %v1551, %v1548
        %v1647 = vpack.c.bf16 %v1559, %v1556
        %v1648 = vpack.c.bf16 %v1567, %v1564
        %v1649 = vpack.c.bf16 %v1575, %v1572
        %v1650 = vpack.c.bf16 %v1583, %v1580
        %v1651 = vpack.c.bf16 %v1591, %v1588
        %v1652 = vpack.c.bf16 %v1599, %v1596
        %v1653 = vpack.c.bf16 %v1607, %v1604
        %v1654 = vpack.c.bf16 %v1615, %v1612
        %v1655 = vpack.c.bf16 %v1623, %v1620
        %v1656 = vpack.c.bf16 %v1631, %v1628
        %v1657 = vpack.c.bf16 %v1639, %v1636
        %v1674 = vunpack.c.l.b16 %v1642
        %v1675 = vunpack.c.h.b16 %v1642
        %v1676 = vunpack.c.l.b16 %v1643
        %v1677 = vunpack.c.h.b16 %v1643
        %v1678 = vunpack.c.l.b16 %v1644
        %v1679 = vunpack.c.h.b16 %v1644
        %v1680 = vunpack.c.l.b16 %v1645
        %v1681 = vunpack.c.h.b16 %v1645
        %v1682 = vunpack.c.l.b16 %v1646
        %v1683 = vunpack.c.h.b16 %v1646
        %v1684 = vunpack.c.l.b16 %v1647
        %v1685 = vunpack.c.h.b16 %v1647
        %v1686 = vunpack.c.l.b16 %v1648
        %v1687 = vunpack.c.h.b16 %v1648
        %v1688 = vunpack.c.l.b16 %v1649
        %v1689 = vunpack.c.h.b16 %v1649
        %v1690 = vunpack.c.l.b16 %v1650
        %v1691 = vunpack.c.h.b16 %v1650
        %v1692 = vunpack.c.l.b16 %v1651
        %v1693 = vunpack.c.h.b16 %v1651
        %v1694 = vunpack.c.l.b16 %v1652
        %v1695 = vunpack.c.h.b16 %v1652
        %v1696 = vunpack.c.l.b16 %v1653
        %v1697 = vunpack.c.h.b16 %v1653
        %v1698 = vunpack.c.l.b16 %v1654
        %v1699 = vunpack.c.h.b16 %v1654
        %v1700 = vunpack.c.l.b16 %v1655
        %v1701 = vunpack.c.h.b16 %v1655
        %v1702 = vunpack.c.l.b16 %v1656
        %v1703 = vunpack.c.h.b16 %v1656
        %v1704 = vunpack.c.l.b16 %v1657
        %v1705 = vunpack.c.h.b16 %v1657
        %v1706 = vpack.c.b16 %v1674, %v1674
        %v1707 = vpack.c.b16 %v1675, %v1675
        %v1708 = vpack.c.b16 %v1676, %v1676
        %v1709 = vpack.c.b16 %v1677, %v1677
        %v1710 = vpack.c.b16 %v1678, %v1678
        %v1711 = vpack.c.b16 %v1679, %v1679
        %v1712 = vpack.c.b16 %v1680, %v1680
        %v1713 = vpack.c.b16 %v1681, %v1681
        %v1714 = vpack.c.b16 %v1682, %v1682
        %v1715 = vpack.c.b16 %v1683, %v1683
        %v1716 = vpack.c.b16 %v1684, %v1684
        %v1717 = vpack.c.b16 %v1685, %v1685
        %v1718 = vpack.c.b16 %v1686, %v1686
        %v1719 = vpack.c.b16 %v1687, %v1687
        %v1720 = vpack.c.b16 %v1688, %v1688
        %v1721 = vpack.c.b16 %v1689, %v1689
        %v1722 = vpack.c.b16 %v1690, %v1690
        %v1723 = vpack.c.b16 %v1691, %v1691
        %v1724 = vpack.c.b16 %v1692, %v1692
        %v1725 = vpack.c.b16 %v1693, %v1693
        %v1726 = vpack.c.b16 %v1694, %v1694
        %v1727 = vpack.c.b16 %v1695, %v1695
        %v1728 = vpack.c.b16 %v1696, %v1696
        %v1729 = vpack.c.b16 %v1697, %v1697
        %v1730 = vpack.c.b16 %v1698, %v1698
        %v1731 = vpack.c.b16 %v1699, %v1699
        %v1732 = vpack.c.b16 %v1700, %v1700
        %v1733 = vpack.c.b16 %v1701, %v1701
        %v1734 = vpack.c.b16 %v1702, %v1702
        %v1735 = vpack.c.b16 %v1703, %v1703
        %v1736 = vpack.c.b16 %v1704, %v1704
        %v1737 = vpack.c.b16 %v1705, %v1705
        %1770 = vst [vmem:[%s272] sm:$0xf] %v1706
        %1771 = vst [vmem:[%s272 + $0x4] sm:$0xf] %v1707
        %1772 = vst [vmem:[%s272 + $0x8] sm:$0xf] %v1708
        %1773 = vst [vmem:[%s272 + $0xc] sm:$0xf] %v1709
        %1774 = vst [vmem:[%s272 + $0x10] sm:$0xf] %v1710
        %1775 = vst [vmem:[%s272 + $0x14] sm:$0xf] %v1711
        %1776 = vst [vmem:[%s272 + $0x18] sm:$0xf] %v1712
        %1777 = vst [vmem:[%s272 + $0x1c] sm:$0xf] %v1713
        %1778 = vst [vmem:[%s272 + $0x20] sm:$0xf] %v1714
        %1779 = vst [vmem:[%s272 + $0x24] sm:$0xf] %v1715
        %1780 = vst [vmem:[%s272 + $0x28] sm:$0xf] %v1716
        %1781 = vst [vmem:[%s272 + $0x2c] sm:$0xf] %v1717
        %1782 = vst [vmem:[%s272 + $0x30] sm:$0xf] %v1718
        %1783 = vst [vmem:[%s272 + $0x34] sm:$0xf] %v1719
        %1784 = vst [vmem:[%s272 + $0x38] sm:$0xf] %v1720
        %1785 = vst [vmem:[%s272 + $0x3c] sm:$0xf] %v1721
        %1786 = vst [vmem:[%s272 + $0x40] sm:$0xf] %v1722
        %1787 = vst [vmem:[%s272 + $0x44] sm:$0xf] %v1723
        %1788 = vst [vmem:[%s272 + $0x48] sm:$0xf] %v1724
        %1789 = vst [vmem:[%s272 + $0x4c] sm:$0xf] %v1725
        %1790 = vst [vmem:[%s272 + $0x50] sm:$0xf] %v1726
        %1791 = vst [vmem:[%s272 + $0x54] sm:$0xf] %v1727
        %1792 = vst [vmem:[%s272 + $0x58] sm:$0xf] %v1728
        %1793 = vst [vmem:[%s272 + $0x5c] sm:$0xf] %v1729
        %1794 = vst [vmem:[%s272 + $0x60] sm:$0xf] %v1730
        %1795 = vst [vmem:[%s272 + $0x64] sm:$0xf] %v1731
        %1796 = vst [vmem:[%s272 + $0x68] sm:$0xf] %v1732
        %1797 = vst [vmem:[%s272 + $0x6c] sm:$0xf] %v1733
        %1798 = vst [vmem:[%s272 + $0x70] sm:$0xf] %v1734
        %1799 = vst [vmem:[%s272 + $0x74] sm:$0xf] %v1735
        %1800 = vst [vmem:[%s272 + $0x78] sm:$0xf] %v1736
        %1801 = vst [vmem:[%s272 + $0x7c] sm:$0xf] %v1737
        %s1802 = sand.u32 %s141, 1
        %s1803 = scalar_lea.sflag [#allocation4], %s1802
        %s1804 = sand.u32 %s141, 1
        %s1805 = smul.addr %s1804, 128
        %s1806 = scalar_lea.vmem [#allocation8], %s1805
        // Predicated region
        $region53: #{tpu_custom_call.1} parent=39 // pred_check
          %p1807 = pneg %p151
        $region54: #{tpu_custom_call.1} parent=39 // pred_check_branch
          %1809 = sbr.rel (%p1807) target = $region56
        $region55: #{tpu_custom_call.1} parent=39 // pred_region
          %s1810 = smul.u32 32, %s23
          %s1812 = ssub.s32 2048, 2048
          %1813 = vsyncadd %s1803, %s1812
          %s1814 = smul.addr %s1810, 64
          %s1815 = scalar_lea.hbm %s5, %s1814
          %s1816 = sshll.u32 %s1806, 4
          %s1817 = int_to_ptr.vmem [resolvable:$true] %s1816
          %1822 = dma.vmem_to_hbm [thread:$0]  %s1817, 2048, %s1815, %s1803, 64, 64, 4
        $region56: #{tpu_custom_call.1} parent=39 // pred_fallthru
          _
      $region40: #{tpu_custom_call.1} parent=5 // pred_fallthru
        _
      %p1823 = scmp.le.s32.totalorder 2, %s18
      // Predicated region
      $region57: #{tpu_custom_call.1} parent=5 // pred_check
        %p1824 = pneg %p1823
      $region58: #{tpu_custom_call.1} parent=5 // pred_check_branch
        %1826 = sbr.rel (%p1824) target = $region60
      $region59: #{tpu_custom_call.1} parent=5 // pred_region
        %s1827 = ssub.s32 %s18, 2
        // Predicated region
        $region61: #{tpu_custom_call.1} parent=59 // pred_check
          %p1828 = pneg %p157
        $region62: #{tpu_custom_call.1} parent=59 // pred_check_branch
          %1830 = sbr.rel (%p1828) target = $region64
        $region63: #{tpu_custom_call.1} parent=59 // pred_region
          %s1831 = sand.u32 %s142, 1
          %s1832 = scalar_lea.sflag [#allocation4], %s1831
          %s1833 = sand.u32 %s142, 1
          %s1834 = smul.addr %s1833, 128
          %s1835 = scalar_lea.vmem [#allocation8], %s1834
          %1836 = dma.done %s1832, 2048
        $region64: #{tpu_custom_call.1} parent=59 // pred_fallthru
          _
      $region60: #{tpu_custom_call.1} parent=5 // pred_fallthru
        _
    $region6: #{tpu_custom_call.1} parent=1 // loop_footer
      %s22 = sadd.s32 1, %s18
    $region7: #{tpu_custom_call.1} parent=1 // loop_footer_branch
      %17 = sbr.rel target = $region3
    $region8: #{tpu_custom_call.1} parent=1 // loop_exit
      _
    %1837 = vsyncpa [#allocation3], 1
    %s1838 = scalar_lea.sflag [#allocation3], 1
    %1839 = vsyncpa %s1838, 1
    %1840 = vsyncpa [#allocation6], 1
    %1841 = vsyncpa [#allocation4], 1
    %s1842 = scalar_lea.sflag [#allocation4], 1
    %1843 = vsyncpa %s1842, 1

</llo_original>
